<compile_context>
chip_gen: v7x
topology: tpu7x:2x2x1
jax: 0.10.0
libtpu: 0.0.40
codegen_flags: <defaults>
</compile_context>

<pallas_src>
import functools

import jax
import jax.numpy as jnp
from jax import lax
from jax.experimental import pallas as pl
from jax.experimental.pallas import tpu as pltpu


_OUT_ROWS = 16
# output slab sublane layout (points on lanes):
#   0 sdf | 1..3 gradients xyz | 4..6 normal | 7..9 rgb | 10 density | 11 alpha | 12..15 pad


def _sdf_field_kernel(scal_ref, pts_ref, vol_ref, out_ref, *, dims):
    """One point tile: single one-hot row-select matmul + lane-dense trilinear heads."""
    Z, Y, X = dims
    Xp, Yp = X + 2, Y + 2
    TP = pts_ref.shape[1]
    Vp = vol_ref.shape[1]               # padded flattened (Z+2)(Y+2)(X+2), mult of 128

    # packed per-point input rows: [fx fy fz dx dy dz delta 0], points on lanes
    fx = pts_ref[0:1, :]
    fy = pts_ref[1:2, :]
    fz = pts_ref[2:3, :]
    dirx = pts_ref[3:4, :]
    diry = pts_ref[4:5, :]
    dirz = pts_ref[5:6, :]
    delta = pts_ref[6:7, :]

    x0f = jnp.floor(fx)
    y0f = jnp.floor(fy)
    z0f = jnp.floor(fz)
    tx = fx - x0f
    ty = fy - y0f
    tz = fz - z0f
    x0 = x0f.astype(jnp.int32)
    y0 = y0f.astype(jnp.int32)
    z0 = z0f.astype(jnp.int32)

    # Base-corner index into the zero-padded (Z+2, Y+2, X+2) grid.  Any base with
    # x0 in [-1, X-1] (etc.) maps inside the padding; corners falling outside the
    # real volume read the baked-in zeros (padding_mode='zeros').  Points whose
    # base is fully outside get flat = -1 -> empty one-hot -> zero sample & grad.
    valid = ((x0 >= -1) & (x0 <= X - 1)
             & (y0 >= -1) & (y0 <= Y - 1)
             & (z0 >= -1) & (z0 <= Z - 1))
    flat = (z0 + 1) * (Yp * Xp) + (y0 + 1) * Xp + (x0 + 1)
    flat = jnp.where(valid, flat, -1)                              # (1, TP) int32

    # single one-hot + single MXU matmul: (32, Vp) @ (Vp, TP) -> (32, TP)
    iota_v = lax.broadcasted_iota(jnp.int32, (Vp, 1), 0)
    onehot = jnp.where(iota_v == flat, 1.0, 0.0)                   # (Vp, TP), only big transient
    data = jnp.dot(vol_ref[...], onehot, preferred_element_type=jnp.float32)

    # trilinear value + analytic coordinate gradients from the 32 corner rows
    wx = (1.0 - tx, tx)
    wy = (1.0 - ty, ty)
    wz = (1.0 - tz, tz)

    zero = jnp.zeros_like(tx)
    sdf = zero
    gx = zero
    gy = zero
    gz = zero
    rr = zero
    rg = zero
    rb = zero
    for cz in (0, 1):
        for cy in (0, 1):
            for cx in (0, 1):
                c = cz * 4 + cy * 2 + cx
                s = data[c:c + 1, :]                               # corner sdf, (1, TP)
                wyz = wy[cy] * wz[cz]
                wxz = wx[cx] * wz[cz]
                wxy = wx[cx] * wy[cy]
                w = wx[cx] * wyz
                sdf = sdf + w * s
                if cx:
                    gx = gx + wyz * s
                else:
                    gx = gx - wyz * s
                if cy:
                    gy = gy + wxz * s
                else:
                    gy = gy - wxz * s
                if cz:
                    gz = gz + wxy * s
                else:
                    gz = gz - wxy * s
                rr = rr + w * data[8 + c:9 + c, :]
                rg = rg + w * data[16 + c:17 + c, :]
                rb = rb + w * data[24 + c:25 + c, :]

    gsx = scal_ref[0]
    gsy = scal_ref[1]
    gsz = scal_ref[2]
    inv_beta = scal_ref[3]
    inv_s = scal_ref[4]
    anneal = scal_ref[5]

    # chain rule through bbox normalization / align_corners mapping
    gx = gx * gsx
    gy = gy * gsy
    gz = gz * gsz

    def sigmoid(v):
        return 1.0 / (1.0 + jnp.exp(-v))

    # rgb head: pre-summed SH groups (folded into the packed volume) + 0.5, sigmoid.
    # (the spherical-harmonics components product in the reference is dead code:
    #  `rgb` is immediately overwritten by torch.sum(sh, dim=-1) + 0.5)
    rgb_r = sigmoid(rr + 0.5)
    rgb_g = sigmoid(rg + 0.5)
    rgb_b = sigmoid(rb + 0.5)

    # normal = F.normalize(gradients, dim=-1), eps = 1e-12
    norm = jnp.maximum(jnp.sqrt(gx * gx + gy * gy + gz * gz), 1e-12)
    nx = gx / norm
    ny = gy / norm
    nz = gz / norm

    # LaplaceDensity without expm1 cancellation:
    #   (1/b)*(0.5 + 0.5*sign(s)*expm1(-|s|/b)) == (1/b)*where(s>=0, 0.5*e, 1-0.5*e)
    e = jnp.exp(-jnp.abs(sdf) * inv_beta)
    dens = inv_beta * jnp.where(sdf >= 0.0, 0.5 * e, 1.0 - 0.5 * e)

    # NeuS alpha (SingleVarianceNetwork inv_s precomputed in the wrapper)
    true_cos = dirx * gx + diry * gy + dirz * gz
    iter_cos = -(jnp.maximum(-true_cos * 0.5 + 0.5, 0.0) * (1.0 - anneal)
                 + jnp.maximum(-true_cos, 0.0) * anneal)
    est_next = sdf + iter_cos * delta * 0.5
    est_prev = sdf - iter_cos * delta * 0.5
    prev_cdf = sigmoid(est_prev * inv_s)
    next_cdf = sigmoid(est_next * inv_s)
    alpha = jnp.clip((prev_cdf - next_cdf + 1e-5) / (prev_cdf + 1e-5), 0.0, 1.0)

    # direct per-field row stores into the (16, TP) lane-dense output block
    out_ref[0:1, :] = sdf
    out_ref[1:2, :] = gx
    out_ref[2:3, :] = gy
    out_ref[3:4, :] = gz
    out_ref[4:5, :] = nx
    out_ref[5:6, :] = ny
    out_ref[6:7, :] = nz
    out_ref[7:8, :] = rgb_r
    out_ref[8:9, :] = rgb_g
    out_ref[9:10, :] = rgb_b
    out_ref[10:11, :] = dens
    out_ref[11:12, :] = alpha
    out_ref[12:16, :] = jnp.zeros((4, TP), jnp.float32)


def sdf_field_exp_forward(points, directions, deltas, vol_sdf, vol_sh,
                          scene_bbox, scene_scale,
                          beta_param, beta_min, variance_param,
                          cos_anneal_ratio=1.0):
    """JAX wrapper reproducing SDFFieldExp.forward.

    points/directions: (N, K, 3); deltas: (N, K, 1)
    vol_sdf: (1, Z, Y, X); vol_sh: (3*levels^2, Z, Y, X)
    """
    N, K, _ = points.shape
    C0, Z, Y, X = vol_sdf.shape
    C1 = vol_sh.shape[0]
    assert C0 == 1 and C1 % 3 == 0
    group = C1 // 3
    P = N * K

    # lane-dense point tiling: points on lanes, TP a multiple of 128
    TP = min(512, ((P + 127) // 128) * 128)
    P_pad = ((P + TP - 1) // TP) * TP

    bbox = jnp.asarray(scene_bbox, jnp.float32)
    bmin = bbox[:3]
    brange = bbox[3:] - bbox[:3]
    dims_xyz = jnp.asarray([X, Y, Z], jnp.float32)

    pts = points.reshape(P, 3).astype(jnp.float32)
    pts_norm = (pts * scene_scale - bmin) / brange * 2.0 - 1.0
    f = (pts_norm + 1.0) * 0.5 * (dims_xyz - 1.0)          # voxel coords (align_corners)

    dirs = directions.reshape(P, 3).astype(jnp.float32)
    dels = deltas.reshape(P, 1).astype(jnp.float32)

    # (8, P_pad) packed per-point rows: [fx fy fz dx dy dz delta 0]
    pts8 = jnp.concatenate([f, dirs, dels, jnp.zeros((P, 1), jnp.float32)], axis=-1)
    pts8 = jnp.pad(pts8, ((0, P_pad - P), (0, 0))).T        # (8, P_pad)

    # --- augmented packed volume -------------------------------------------------
    # For every voxel of the zero-padded (Z+2, Y+2, X+2) grid (the trilinear cell's
    # base corner), store the sdf and the 3 pre-summed RGB SH-group values of all
    # 8 cell corners, so the kernel needs a single row-select per point.
    # Row layout (32 rows), c = cz*4 + cy*2 + cx:
    #   row      c : sdf at corner c
    #   row  8 + c : SH group-R sum at corner c
    #   row 16 + c : SH group-G sum at corner c
    #   row 24 + c : SH group-B sum at corner c
    Zp, Yp, Xp = Z + 2, Y + 2, X + 2
    V_true = Zp * Yp * Xp
    V_pad = ((V_true + 127) // 128) * 128

    rgb_groups = vol_sh.astype(jnp.float32).reshape(3, group, Z, Y, X).sum(axis=1)
    base = jnp.concatenate([vol_sdf.astype(jnp.float32), rgb_groups], axis=0)   # (4, Z, Y, X)
    big = jnp.pad(base, ((0, 0), (1, 2), (1, 2), (1, 2)))                        # (4, Z+3, Y+3, X+3)
    corners = []
    for cz in (0, 1):
        for cy in (0, 1):
            for cx in (0, 1):
                corners.append(big[:, cz:cz + Zp, cy:cy + Yp, cx:cx + Xp])       # (4, Zp, Yp, Xp)
    vol32 = jnp.stack(corners, axis=1).reshape(32, V_true)                       # row = ch*8 + corner
    vol32 = jnp.pad(vol32, ((0, 0), (0, V_pad - V_true)))                        # (32, V_pad)

    # d(voxel_coord)/d(point) per axis (chain rule through bbox normalization)
    gscale = (dims_xyz - 1.0) * scene_scale / brange        # (3,)

    beta = jnp.abs(jnp.asarray(beta_param, jnp.float32)) + jnp.asarray(beta_min, jnp.float32)
    inv_beta = (1.0 / beta).reshape(-1)[:1]                                      # LaplaceDensity.get_beta
    inv_s = jnp.clip(jnp.exp(jnp.asarray(variance_param, jnp.float32) * 10.0),
                     1e-6, 1e6).reshape(-1)[:1]                                  # SingleVarianceNetwork
    scalars = jnp.concatenate([
        gscale, inv_beta, inv_s,
        jnp.asarray([cos_anneal_ratio, 0.0, 0.0], jnp.float32),
    ]).astype(jnp.float32)                                                       # (8,)

    kernel = functools.partial(_sdf_field_kernel, dims=(Z, Y, X))

    out = pl.pallas_call(
        kernel,
        out_shape=jax.ShapeDtypeStruct((_OUT_ROWS, P_pad), jnp.float32),
        grid_spec=pltpu.PrefetchScalarGridSpec(
            num_scalar_prefetch=1,
            grid=(P_pad // TP,),
            in_specs=[
                pl.BlockSpec((8, TP), lambda i, s: (0, i)),            # point tile (lane-dense)
                pl.BlockSpec((32, V_pad), lambda i, s: (0, 0)),        # resident packed volume
            ],
            out_specs=pl.BlockSpec((_OUT_ROWS, TP), lambda i, s: (0, i)),
        ),
        compiler_params=pltpu.CompilerParams(
            dimension_semantics=("parallel",),                         # megacore / 2-TC split
            vmem_limit_bytes=48 * 1024 * 1024),                        # < v7x 64 MiB physical
    )(scalars, pts8, vol32)

    out = out[:, :P]                                                   # (16, P)
    return {
        'rgb': out[7:10].T.reshape(N, K, 3),
        'sdf': out[0].reshape(N, K, 1),
        'gradients': out[1:4].T.reshape(N, K, 3),
        'normal': out[4:7].T.reshape(N, K, 3),
        'density': out[10].reshape(N, K, 1),
        'alphas': out[11].reshape(N, K, 1),
    }


if __name__ == "__main__":
    key = jax.random.PRNGKey(0)
    k1, k2, k3, k4, k5 = jax.random.split(key, 5)

    N, K = 2, 8                 # rays, samples per ray
    Z = Y = X = 8               # feature volume spatial dims
    levels = 2
    C1 = 3 * levels * levels    # SH feature channels = 12
    beta_init = 0.1

    points = jax.random.uniform(k1, (N, K, 3), jnp.float32, minval=-1.2, maxval=1.2)
    directions = jax.random.normal(k2, (N, K, 3), jnp.float32)
    directions = directions / jnp.linalg.norm(directions, axis=-1, keepdims=True)
    deltas = jax.random.uniform(k3, (N, K, 1), jnp.float32, minval=0.01, maxval=0.1)

    vol_sdf = 0.5 * jax.random.normal(k4, (1, Z, Y, X), jnp.float32)
    vol_sh = 0.5 * jax.random.normal(k5, (C1, Z, Y, X), jnp.float32)

    scene_bbox = [-1.0, -1.0, -1.0, 1.0, 1.0, 1.0]
    scene_scale = 1.0

    # deterministic parameter init (LaplaceDensity / SingleVarianceNetwork)
    beta_param = jnp.full((1,), beta_init, jnp.float32)
    beta_min = jnp.full((1,), 1e-4, jnp.float32)
    variance_param = jnp.full((1,), beta_init, jnp.float32)

    outputs = sdf_field_exp_forward(points, directions, deltas, vol_sdf, vol_sh,
                                    scene_bbox, scene_scale,
                                    beta_param, beta_min, variance_param,
                                    cos_anneal_ratio=1.0)
    jax.block_until_ready(outputs)
    print("KERNEL_OK")
</pallas_src>

<mosaic_0001>
module attributes {stable_mosaic.version = 11 : i64} {
  func.func @_sdf_field_kernel(%arg0: i32, %arg1: memref<8xf32, #tpu.memory_space<smem>>, %arg2: memref<8x128xf32, #tpu.memory_space<vmem>>, %arg3: memref<32x1024xf32, #tpu.memory_space<vmem>>, %arg4: memref<16x128xf32, #tpu.memory_space<vmem>>) attributes {dimension_semantics = [#tpu.dimension_semantics<parallel>], iteration_bounds = array<i64: 1>, scalar_prefetch = 1 : i64, scratch_operands = 0 : i64, tpu.core_type = #tpu.core_type<tc>, window_params = [{transform_indices = @transform_0, window_bounds = array<i64: 8, 128>}, {pipeline_mode = #tpu.pipeline_mode<synchronous>, transform_indices = @transform_1, window_bounds = array<i64: 32, 1024>}, {transform_indices = @transform_2, window_bounds = array<i64: 16, 128>}]} {
    %c0 = arith.constant 0 : index
    %c0_0 = arith.constant 0 : index
    %0 = vector.load %arg2[%c0, %c0_0] : memref<8x128xf32, #tpu.memory_space<vmem>>, vector<1x128xf32>
    %c1 = arith.constant 1 : index
    %c0_1 = arith.constant 0 : index
    %1 = vector.load %arg2[%c1, %c0_1] : memref<8x128xf32, #tpu.memory_space<vmem>>, vector<1x128xf32>
    %c2 = arith.constant 2 : index
    %c0_2 = arith.constant 0 : index
    %2 = vector.load %arg2[%c2, %c0_2] : memref<8x128xf32, #tpu.memory_space<vmem>>, vector<1x128xf32>
    %c3 = arith.constant 3 : index
    %c0_3 = arith.constant 0 : index
    %3 = vector.load %arg2[%c3, %c0_3] : memref<8x128xf32, #tpu.memory_space<vmem>>, vector<1x128xf32>
    %c4 = arith.constant 4 : index
    %c0_4 = arith.constant 0 : index
    %4 = vector.load %arg2[%c4, %c0_4] : memref<8x128xf32, #tpu.memory_space<vmem>>, vector<1x128xf32>
    %c5 = arith.constant 5 : index
    %c0_5 = arith.constant 0 : index
    %5 = vector.load %arg2[%c5, %c0_5] : memref<8x128xf32, #tpu.memory_space<vmem>>, vector<1x128xf32>
    %c6 = arith.constant 6 : index
    %c0_6 = arith.constant 0 : index
    %6 = vector.load %arg2[%c6, %c0_6] : memref<8x128xf32, #tpu.memory_space<vmem>>, vector<1x128xf32>
    %7 = math.floor %0 : vector<1x128xf32>
    %8 = math.floor %1 : vector<1x128xf32>
    %9 = math.floor %2 : vector<1x128xf32>
    %10 = arith.subf %0, %7 : vector<1x128xf32>
    %11 = arith.subf %1, %8 : vector<1x128xf32>
    %12 = arith.subf %2, %9 : vector<1x128xf32>
    %13 = arith.fptosi %7 : vector<1x128xf32> to vector<1x128xi32>
    %14 = arith.fptosi %8 : vector<1x128xf32> to vector<1x128xi32>
    %15 = arith.fptosi %9 : vector<1x128xf32> to vector<1x128xi32>
    %c-1_i32 = arith.constant -1 : i32
    %16 = vector.broadcast %c-1_i32 : i32 to vector<1x128xi32>
    %17 = arith.cmpi sge, %13, %16 : vector<1x128xi32>
    %c7_i32 = arith.constant 7 : i32
    %18 = vector.broadcast %c7_i32 : i32 to vector<1x128xi32>
    %19 = arith.cmpi sle, %13, %18 : vector<1x128xi32>
    %20 = arith.andi %17, %19 : vector<1x128xi1>
    %c-1_i32_7 = arith.constant -1 : i32
    %21 = vector.broadcast %c-1_i32_7 : i32 to vector<1x128xi32>
    %22 = arith.cmpi sge, %14, %21 : vector<1x128xi32>
    %23 = arith.andi %20, %22 : vector<1x128xi1>
    %c7_i32_8 = arith.constant 7 : i32
    %24 = vector.broadcast %c7_i32_8 : i32 to vector<1x128xi32>
    %25 = arith.cmpi sle, %14, %24 : vector<1x128xi32>
    %26 = arith.andi %23, %25 : vector<1x128xi1>
    %c-1_i32_9 = arith.constant -1 : i32
    %27 = vector.broadcast %c-1_i32_9 : i32 to vector<1x128xi32>
    %28 = arith.cmpi sge, %15, %27 : vector<1x128xi32>
    %29 = arith.andi %26, %28 : vector<1x128xi1>
    %c7_i32_10 = arith.constant 7 : i32
    %30 = vector.broadcast %c7_i32_10 : i32 to vector<1x128xi32>
    %31 = arith.cmpi sle, %15, %30 : vector<1x128xi32>
    %32 = arith.andi %29, %31 : vector<1x128xi1>
    %c1_i32 = arith.constant 1 : i32
    %33 = vector.broadcast %c1_i32 : i32 to vector<1x128xi32>
    %34 = arith.addi %15, %33 : vector<1x128xi32>
    %c100_i32 = arith.constant 100 : i32
    %35 = vector.broadcast %c100_i32 : i32 to vector<1x128xi32>
    %36 = arith.muli %34, %35 : vector<1x128xi32>
    %c1_i32_11 = arith.constant 1 : i32
    %37 = vector.broadcast %c1_i32_11 : i32 to vector<1x128xi32>
    %38 = arith.addi %14, %37 : vector<1x128xi32>
    %c10_i32 = arith.constant 10 : i32
    %39 = vector.broadcast %c10_i32 : i32 to vector<1x128xi32>
    %40 = arith.muli %38, %39 : vector<1x128xi32>
    %41 = arith.addi %36, %40 : vector<1x128xi32>
    %c1_i32_12 = arith.constant 1 : i32
    %42 = vector.broadcast %c1_i32_12 : i32 to vector<1x128xi32>
    %43 = arith.addi %13, %42 : vector<1x128xi32>
    %44 = arith.addi %41, %43 : vector<1x128xi32>
    %c-1_i32_13 = arith.constant -1 : i32
    %45 = vector.broadcast %c-1_i32_13 : i32 to vector<1x128xi32>
    %46 = arith.select %32, %44, %45 : vector<1x128xi1>, vector<1x128xi32>
    %47 = tpu.iota {dimensions = array<i32: 0>} : vector<1024x1xi32>
    %48 = vector.broadcast %47 : vector<1024x1xi32> to vector<1024x128xi32>
    %49 = vector.broadcast %46 : vector<1x128xi32> to vector<1024x128xi32>
    %50 = arith.cmpi eq, %48, %49 : vector<1024x128xi32>
    %cst = arith.constant 1.000000e+00 : f32
    %cst_14 = arith.constant 0.000000e+00 : f32
    %51 = vector.broadcast %cst : f32 to vector<1024x128xf32>
    %52 = vector.broadcast %cst_14 : f32 to vector<1024x128xf32>
    %53 = arith.select %50, %51, %52 : vector<1024x128xi1>, vector<1024x128xf32>
    %c0_15 = arith.constant 0 : index
    %c0_16 = arith.constant 0 : index
    %54 = vector.load %arg3[%c0_15, %c0_16] : memref<32x1024xf32, #tpu.memory_space<vmem>>, vector<32x1024xf32>
    %cst_17 = arith.constant dense<0.000000e+00> : vector<32x128xf32>
    %55 = tpu.matmul %54, %53, %cst_17 {dimension_numbers = #tpu.dot_dimension_numbers<[1], [0], [0], [1], [0, 0, 1, 1], [], []>} : vector<32x1024xf32>, vector<1024x128xf32>, vector<32x128xf32> -> vector<32x128xf32>
    %cst_18 = arith.constant 1.000000e+00 : f32
    %56 = vector.broadcast %cst_18 : f32 to vector<1x128xf32>
    %57 = arith.subf %56, %10 : vector<1x128xf32>
    %cst_19 = arith.constant 1.000000e+00 : f32
    %58 = vector.broadcast %cst_19 : f32 to vector<1x128xf32>
    %59 = arith.subf %58, %11 : vector<1x128xf32>
    %cst_20 = arith.constant 1.000000e+00 : f32
    %60 = vector.broadcast %cst_20 : f32 to vector<1x128xf32>
    %61 = arith.subf %60, %12 : vector<1x128xf32>
    %cst_21 = arith.constant 0.000000e+00 : f32
    %62 = vector.broadcast %cst_21 : f32 to vector<1x128xf32>
    %63 = vector.extract_strided_slice %55 {offsets = [0, 0], sizes = [1, 128], strides = [1, 1]} : vector<32x128xf32> to vector<1x128xf32>
    %64 = arith.mulf %59, %61 : vector<1x128xf32>
    %65 = arith.mulf %57, %61 : vector<1x128xf32>
    %66 = arith.mulf %57, %59 : vector<1x128xf32>
    %67 = arith.mulf %57, %64 : vector<1x128xf32>
    %68 = arith.mulf %67, %63 : vector<1x128xf32>
    %69 = arith.addf %62, %68 : vector<1x128xf32>
    %70 = arith.mulf %64, %63 : vector<1x128xf32>
    %71 = arith.subf %62, %70 : vector<1x128xf32>
    %72 = arith.mulf %65, %63 : vector<1x128xf32>
    %73 = arith.subf %62, %72 : vector<1x128xf32>
    %74 = arith.mulf %66, %63 : vector<1x128xf32>
    %75 = arith.subf %62, %74 : vector<1x128xf32>
    %76 = vector.extract_strided_slice %55 {offsets = [8, 0], sizes = [1, 128], strides = [1, 1]} : vector<32x128xf32> to vector<1x128xf32>
    %77 = arith.mulf %67, %76 : vector<1x128xf32>
    %78 = arith.addf %62, %77 : vector<1x128xf32>
    %79 = vector.extract_strided_slice %55 {offsets = [16, 0], sizes = [1, 128], strides = [1, 1]} : vector<32x128xf32> to vector<1x128xf32>
    %80 = arith.mulf %67, %79 : vector<1x128xf32>
    %81 = arith.addf %62, %80 : vector<1x128xf32>
    %82 = vector.extract_strided_slice %55 {offsets = [24, 0], sizes = [1, 128], strides = [1, 1]} : vector<32x128xf32> to vector<1x128xf32>
    %83 = arith.mulf %67, %82 : vector<1x128xf32>
    %84 = arith.addf %62, %83 : vector<1x128xf32>
    %85 = vector.extract_strided_slice %55 {offsets = [1, 0], sizes = [1, 128], strides = [1, 1]} : vector<32x128xf32> to vector<1x128xf32>
    %86 = arith.mulf %59, %61 : vector<1x128xf32>
    %87 = arith.mulf %10, %61 : vector<1x128xf32>
    %88 = arith.mulf %10, %59 : vector<1x128xf32>
    %89 = arith.mulf %10, %86 : vector<1x128xf32>
    %90 = arith.mulf %89, %85 : vector<1x128xf32>
    %91 = arith.addf %69, %90 : vector<1x128xf32>
    %92 = arith.mulf %86, %85 : vector<1x128xf32>
    %93 = arith.addf %71, %92 : vector<1x128xf32>
    %94 = arith.mulf %87, %85 : vector<1x128xf32>
    %95 = arith.subf %73, %94 : vector<1x128xf32>
    %96 = arith.mulf %88, %85 : vector<1x128xf32>
    %97 = arith.subf %75, %96 : vector<1x128xf32>
    %98 = vector.extract_strided_slice %55 {offsets = [9, 0], sizes = [1, 128], strides = [1, 1]} : vector<32x128xf32> to vector<1x128xf32>
    %99 = arith.mulf %89, %98 : vector<1x128xf32>
    %100 = arith.addf %78, %99 : vector<1x128xf32>
    %101 = vector.extract_strided_slice %55 {offsets = [17, 0], sizes = [1, 128], strides = [1, 1]} : vector<32x128xf32> to vector<1x128xf32>
    %102 = arith.mulf %89, %101 : vector<1x128xf32>
    %103 = arith.addf %81, %102 : vector<1x128xf32>
    %104 = vector.extract_strided_slice %55 {offsets = [25, 0], sizes = [1, 128], strides = [1, 1]} : vector<32x128xf32> to vector<1x128xf32>
    %105 = arith.mulf %89, %104 : vector<1x128xf32>
    %106 = arith.addf %84, %105 : vector<1x128xf32>
    %107 = vector.extract_strided_slice %55 {offsets = [2, 0], sizes = [1, 128], strides = [1, 1]} : vector<32x128xf32> to vector<1x128xf32>
    %108 = arith.mulf %11, %61 : vector<1x128xf32>
    %109 = arith.mulf %57, %61 : vector<1x128xf32>
    %110 = arith.mulf %57, %11 : vector<1x128xf32>
    %111 = arith.mulf %57, %108 : vector<1x128xf32>
    %112 = arith.mulf %111, %107 : vector<1x128xf32>
    %113 = arith.addf %91, %112 : vector<1x128xf32>
    %114 = arith.mulf %108, %107 : vector<1x128xf32>
    %115 = arith.subf %93, %114 : vector<1x128xf32>
    %116 = arith.mulf %109, %107 : vector<1x128xf32>
    %117 = arith.addf %95, %116 : vector<1x128xf32>
    %118 = arith.mulf %110, %107 : vector<1x128xf32>
    %119 = arith.subf %97, %118 : vector<1x128xf32>
    %120 = vector.extract_strided_slice %55 {offsets = [10, 0], sizes = [1, 128], strides = [1, 1]} : vector<32x128xf32> to vector<1x128xf32>
    %121 = arith.mulf %111, %120 : vector<1x128xf32>
    %122 = arith.addf %100, %121 : vector<1x128xf32>
    %123 = vector.extract_strided_slice %55 {offsets = [18, 0], sizes = [1, 128], strides = [1, 1]} : vector<32x128xf32> to vector<1x128xf32>
    %124 = arith.mulf %111, %123 : vector<1x128xf32>
    %125 = arith.addf %103, %124 : vector<1x128xf32>
    %126 = vector.extract_strided_slice %55 {offsets = [26, 0], sizes = [1, 128], strides = [1, 1]} : vector<32x128xf32> to vector<1x128xf32>
    %127 = arith.mulf %111, %126 : vector<1x128xf32>
    %128 = arith.addf %106, %127 : vector<1x128xf32>
    %129 = vector.extract_strided_slice %55 {offsets = [3, 0], sizes = [1, 128], strides = [1, 1]} : vector<32x128xf32> to vector<1x128xf32>
    %130 = arith.mulf %11, %61 : vector<1x128xf32>
    %131 = arith.mulf %10, %61 : vector<1x128xf32>
    %132 = arith.mulf %10, %11 : vector<1x128xf32>
    %133 = arith.mulf %10, %130 : vector<1x128xf32>
    %134 = arith.mulf %133, %129 : vector<1x128xf32>
    %135 = arith.addf %113, %134 : vector<1x128xf32>
    %136 = arith.mulf %130, %129 : vector<1x128xf32>
    %137 = arith.addf %115, %136 : vector<1x128xf32>
    %138 = arith.mulf %131, %129 : vector<1x128xf32>
    %139 = arith.addf %117, %138 : vector<1x128xf32>
    %140 = arith.mulf %132, %129 : vector<1x128xf32>
    %141 = arith.subf %119, %140 : vector<1x128xf32>
    %142 = vector.extract_strided_slice %55 {offsets = [11, 0], sizes = [1, 128], strides = [1, 1]} : vector<32x128xf32> to vector<1x128xf32>
    %143 = arith.mulf %133, %142 : vector<1x128xf32>
    %144 = arith.addf %122, %143 : vector<1x128xf32>
    %145 = vector.extract_strided_slice %55 {offsets = [19, 0], sizes = [1, 128], strides = [1, 1]} : vector<32x128xf32> to vector<1x128xf32>
    %146 = arith.mulf %133, %145 : vector<1x128xf32>
    %147 = arith.addf %125, %146 : vector<1x128xf32>
    %148 = vector.extract_strided_slice %55 {offsets = [27, 0], sizes = [1, 128], strides = [1, 1]} : vector<32x128xf32> to vector<1x128xf32>
    %149 = arith.mulf %133, %148 : vector<1x128xf32>
    %150 = arith.addf %128, %149 : vector<1x128xf32>
    %151 = vector.extract_strided_slice %55 {offsets = [4, 0], sizes = [1, 128], strides = [1, 1]} : vector<32x128xf32> to vector<1x128xf32>
    %152 = arith.mulf %59, %12 : vector<1x128xf32>
    %153 = arith.mulf %57, %12 : vector<1x128xf32>
    %154 = arith.mulf %57, %59 : vector<1x128xf32>
    %155 = arith.mulf %57, %152 : vector<1x128xf32>
    %156 = arith.mulf %155, %151 : vector<1x128xf32>
    %157 = arith.addf %135, %156 : vector<1x128xf32>
    %158 = arith.mulf %152, %151 : vector<1x128xf32>
    %159 = arith.subf %137, %158 : vector<1x128xf32>
    %160 = arith.mulf %153, %151 : vector<1x128xf32>
    %161 = arith.subf %139, %160 : vector<1x128xf32>
    %162 = arith.mulf %154, %151 : vector<1x128xf32>
    %163 = arith.addf %141, %162 : vector<1x128xf32>
    %164 = vector.extract_strided_slice %55 {offsets = [12, 0], sizes = [1, 128], strides = [1, 1]} : vector<32x128xf32> to vector<1x128xf32>
    %165 = arith.mulf %155, %164 : vector<1x128xf32>
    %166 = arith.addf %144, %165 : vector<1x128xf32>
    %167 = vector.extract_strided_slice %55 {offsets = [20, 0], sizes = [1, 128], strides = [1, 1]} : vector<32x128xf32> to vector<1x128xf32>
    %168 = arith.mulf %155, %167 : vector<1x128xf32>
    %169 = arith.addf %147, %168 : vector<1x128xf32>
    %170 = vector.extract_strided_slice %55 {offsets = [28, 0], sizes = [1, 128], strides = [1, 1]} : vector<32x128xf32> to vector<1x128xf32>
    %171 = arith.mulf %155, %170 : vector<1x128xf32>
    %172 = arith.addf %150, %171 : vector<1x128xf32>
    %173 = vector.extract_strided_slice %55 {offsets = [5, 0], sizes = [1, 128], strides = [1, 1]} : vector<32x128xf32> to vector<1x128xf32>
    %174 = arith.mulf %59, %12 : vector<1x128xf32>
    %175 = arith.mulf %10, %12 : vector<1x128xf32>
    %176 = arith.mulf %10, %59 : vector<1x128xf32>
    %177 = arith.mulf %10, %174 : vector<1x128xf32>
    %178 = arith.mulf %177, %173 : vector<1x128xf32>
    %179 = arith.addf %157, %178 : vector<1x128xf32>
    %180 = arith.mulf %174, %173 : vector<1x128xf32>
    %181 = arith.addf %159, %180 : vector<1x128xf32>
    %182 = arith.mulf %175, %173 : vector<1x128xf32>
    %183 = arith.subf %161, %182 : vector<1x128xf32>
    %184 = arith.mulf %176, %173 : vector<1x128xf32>
    %185 = arith.addf %163, %184 : vector<1x128xf32>
    %186 = vector.extract_strided_slice %55 {offsets = [13, 0], sizes = [1, 128], strides = [1, 1]} : vector<32x128xf32> to vector<1x128xf32>
    %187 = arith.mulf %177, %186 : vector<1x128xf32>
    %188 = arith.addf %166, %187 : vector<1x128xf32>
    %189 = vector.extract_strided_slice %55 {offsets = [21, 0], sizes = [1, 128], strides = [1, 1]} : vector<32x128xf32> to vector<1x128xf32>
    %190 = arith.mulf %177, %189 : vector<1x128xf32>
    %191 = arith.addf %169, %190 : vector<1x128xf32>
    %192 = vector.extract_strided_slice %55 {offsets = [29, 0], sizes = [1, 128], strides = [1, 1]} : vector<32x128xf32> to vector<1x128xf32>
    %193 = arith.mulf %177, %192 : vector<1x128xf32>
    %194 = arith.addf %172, %193 : vector<1x128xf32>
    %195 = vector.extract_strided_slice %55 {offsets = [6, 0], sizes = [1, 128], strides = [1, 1]} : vector<32x128xf32> to vector<1x128xf32>
    %196 = arith.mulf %11, %12 : vector<1x128xf32>
    %197 = arith.mulf %57, %12 : vector<1x128xf32>
    %198 = arith.mulf %57, %11 : vector<1x128xf32>
    %199 = arith.mulf %57, %196 : vector<1x128xf32>
    %200 = arith.mulf %199, %195 : vector<1x128xf32>
    %201 = arith.addf %179, %200 : vector<1x128xf32>
    %202 = arith.mulf %196, %195 : vector<1x128xf32>
    %203 = arith.subf %181, %202 : vector<1x128xf32>
    %204 = arith.mulf %197, %195 : vector<1x128xf32>
    %205 = arith.addf %183, %204 : vector<1x128xf32>
    %206 = arith.mulf %198, %195 : vector<1x128xf32>
    %207 = arith.addf %185, %206 : vector<1x128xf32>
    %208 = vector.extract_strided_slice %55 {offsets = [14, 0], sizes = [1, 128], strides = [1, 1]} : vector<32x128xf32> to vector<1x128xf32>
    %209 = arith.mulf %199, %208 : vector<1x128xf32>
    %210 = arith.addf %188, %209 : vector<1x128xf32>
    %211 = vector.extract_strided_slice %55 {offsets = [22, 0], sizes = [1, 128], strides = [1, 1]} : vector<32x128xf32> to vector<1x128xf32>
    %212 = arith.mulf %199, %211 : vector<1x128xf32>
    %213 = arith.addf %191, %212 : vector<1x128xf32>
    %214 = vector.extract_strided_slice %55 {offsets = [30, 0], sizes = [1, 128], strides = [1, 1]} : vector<32x128xf32> to vector<1x128xf32>
    %215 = arith.mulf %199, %214 : vector<1x128xf32>
    %216 = arith.addf %194, %215 : vector<1x128xf32>
    %217 = vector.extract_strided_slice %55 {offsets = [7, 0], sizes = [1, 128], strides = [1, 1]} : vector<32x128xf32> to vector<1x128xf32>
    %218 = arith.mulf %11, %12 : vector<1x128xf32>
    %219 = arith.mulf %10, %12 : vector<1x128xf32>
    %220 = arith.mulf %10, %11 : vector<1x128xf32>
    %221 = arith.mulf %10, %218 : vector<1x128xf32>
    %222 = arith.mulf %221, %217 : vector<1x128xf32>
    %223 = arith.addf %201, %222 : vector<1x128xf32>
    %224 = arith.mulf %218, %217 : vector<1x128xf32>
    %225 = arith.addf %203, %224 : vector<1x128xf32>
    %226 = arith.mulf %219, %217 : vector<1x128xf32>
    %227 = arith.addf %205, %226 : vector<1x128xf32>
    %228 = arith.mulf %220, %217 : vector<1x128xf32>
    %229 = arith.addf %207, %228 : vector<1x128xf32>
    %230 = vector.extract_strided_slice %55 {offsets = [15, 0], sizes = [1, 128], strides = [1, 1]} : vector<32x128xf32> to vector<1x128xf32>
    %231 = arith.mulf %221, %230 : vector<1x128xf32>
    %232 = arith.addf %210, %231 : vector<1x128xf32>
    %233 = vector.extract_strided_slice %55 {offsets = [23, 0], sizes = [1, 128], strides = [1, 1]} : vector<32x128xf32> to vector<1x128xf32>
    %234 = arith.mulf %221, %233 : vector<1x128xf32>
    %235 = arith.addf %213, %234 : vector<1x128xf32>
    %236 = vector.extract_strided_slice %55 {offsets = [31, 0], sizes = [1, 128], strides = [1, 1]} : vector<32x128xf32> to vector<1x128xf32>
    %237 = arith.mulf %221, %236 : vector<1x128xf32>
    %238 = arith.addf %216, %237 : vector<1x128xf32>
    %c0_22 = arith.constant 0 : index
    %239 = memref.load %arg1[%c0_22] : memref<8xf32, #tpu.memory_space<smem>>
    %c1_23 = arith.constant 1 : index
    %240 = memref.load %arg1[%c1_23] : memref<8xf32, #tpu.memory_space<smem>>
    %c2_24 = arith.constant 2 : index
    %241 = memref.load %arg1[%c2_24] : memref<8xf32, #tpu.memory_space<smem>>
    %c3_25 = arith.constant 3 : index
    %242 = memref.load %arg1[%c3_25] : memref<8xf32, #tpu.memory_space<smem>>
    %c4_26 = arith.constant 4 : index
    %243 = memref.load %arg1[%c4_26] : memref<8xf32, #tpu.memory_space<smem>>
    %c5_27 = arith.constant 5 : index
    %244 = memref.load %arg1[%c5_27] : memref<8xf32, #tpu.memory_space<smem>>
    %245 = vector.broadcast %239 : f32 to vector<1x128xf32>
    %246 = arith.mulf %225, %245 : vector<1x128xf32>
    %247 = vector.broadcast %240 : f32 to vector<1x128xf32>
    %248 = arith.mulf %227, %247 : vector<1x128xf32>
    %249 = vector.broadcast %241 : f32 to vector<1x128xf32>
    %250 = arith.mulf %229, %249 : vector<1x128xf32>
    %cst_28 = arith.constant 5.000000e-01 : f32
    %251 = vector.broadcast %cst_28 : f32 to vector<1x128xf32>
    %252 = arith.addf %232, %251 : vector<1x128xf32>
    %cst_29 = arith.constant 0.000000e+00 : f32
    %253 = vector.broadcast %cst_29 : f32 to vector<1x128xf32>
    %254 = arith.subf %253, %252 : vector<1x128xf32>
    %255 = math.exp %254 : vector<1x128xf32>
    %cst_30 = arith.constant 1.000000e+00 : f32
    %256 = vector.broadcast %cst_30 : f32 to vector<1x128xf32>
    %257 = arith.addf %256, %255 : vector<1x128xf32>
    %cst_31 = arith.constant 1.000000e+00 : f32
    %258 = vector.broadcast %cst_31 : f32 to vector<1x128xf32>
    %259 = arith.divf %258, %257 : vector<1x128xf32>
    %cst_32 = arith.constant 5.000000e-01 : f32
    %260 = vector.broadcast %cst_32 : f32 to vector<1x128xf32>
    %261 = arith.addf %235, %260 : vector<1x128xf32>
    %cst_33 = arith.constant 0.000000e+00 : f32
    %262 = vector.broadcast %cst_33 : f32 to vector<1x128xf32>
    %263 = arith.subf %262, %261 : vector<1x128xf32>
    %264 = math.exp %263 : vector<1x128xf32>
    %cst_34 = arith.constant 1.000000e+00 : f32
    %265 = vector.broadcast %cst_34 : f32 to vector<1x128xf32>
    %266 = arith.addf %265, %264 : vector<1x128xf32>
    %cst_35 = arith.constant 1.000000e+00 : f32
    %267 = vector.broadcast %cst_35 : f32 to vector<1x128xf32>
    %268 = arith.divf %267, %266 : vector<1x128xf32>
    %cst_36 = arith.constant 5.000000e-01 : f32
    %269 = vector.broadcast %cst_36 : f32 to vector<1x128xf32>
    %270 = arith.addf %238, %269 : vector<1x128xf32>
    %cst_37 = arith.constant 0.000000e+00 : f32
    %271 = vector.broadcast %cst_37 : f32 to vector<1x128xf32>
    %272 = arith.subf %271, %270 : vector<1x128xf32>
    %273 = math.exp %272 : vector<1x128xf32>
    %cst_38 = arith.constant 1.000000e+00 : f32
    %274 = vector.broadcast %cst_38 : f32 to vector<1x128xf32>
    %275 = arith.addf %274, %273 : vector<1x128xf32>
    %cst_39 = arith.constant 1.000000e+00 : f32
    %276 = vector.broadcast %cst_39 : f32 to vector<1x128xf32>
    %277 = arith.divf %276, %275 : vector<1x128xf32>
    %278 = arith.mulf %246, %246 : vector<1x128xf32>
    %279 = arith.mulf %248, %248 : vector<1x128xf32>
    %280 = arith.addf %278, %279 : vector<1x128xf32>
    %281 = arith.mulf %250, %250 : vector<1x128xf32>
    %282 = arith.addf %280, %281 : vector<1x128xf32>
    %283 = math.sqrt %282 : vector<1x128xf32>
    %cst_40 = arith.constant 9.99999996E-13 : f32
    %284 = vector.broadcast %cst_40 : f32 to vector<1x128xf32>
    %285 = arith.maximumf %283, %284 : vector<1x128xf32>
    %286 = arith.divf %246, %285 : vector<1x128xf32>
    %287 = arith.divf %248, %285 : vector<1x128xf32>
    %288 = arith.divf %250, %285 : vector<1x128xf32>
    %289 = math.absf %223 : vector<1x128xf32>
    %cst_41 = arith.constant 0.000000e+00 : f32
    %290 = vector.broadcast %cst_41 : f32 to vector<1x128xf32>
    %291 = arith.subf %290, %289 : vector<1x128xf32>
    %292 = vector.broadcast %242 : f32 to vector<1x128xf32>
    %293 = arith.mulf %291, %292 : vector<1x128xf32>
    %294 = math.exp %293 : vector<1x128xf32>
    %cst_42 = arith.constant 0.000000e+00 : f32
    %295 = vector.broadcast %cst_42 : f32 to vector<1x128xf32>
    %296 = arith.cmpf oge, %223, %295 : vector<1x128xf32>
    %cst_43 = arith.constant 5.000000e-01 : f32
    %297 = vector.broadcast %cst_43 : f32 to vector<1x128xf32>
    %298 = arith.mulf %297, %294 : vector<1x128xf32>
    %cst_44 = arith.constant 5.000000e-01 : f32
    %299 = vector.broadcast %cst_44 : f32 to vector<1x128xf32>
    %300 = arith.mulf %299, %294 : vector<1x128xf32>
    %cst_45 = arith.constant 1.000000e+00 : f32
    %301 = vector.broadcast %cst_45 : f32 to vector<1x128xf32>
    %302 = arith.subf %301, %300 : vector<1x128xf32>
    %303 = arith.select %296, %298, %302 : vector<1x128xi1>, vector<1x128xf32>
    %304 = vector.broadcast %242 : f32 to vector<1x128xf32>
    %305 = arith.mulf %304, %303 : vector<1x128xf32>
    %306 = arith.mulf %3, %246 : vector<1x128xf32>
    %307 = arith.mulf %4, %248 : vector<1x128xf32>
    %308 = arith.addf %306, %307 : vector<1x128xf32>
    %309 = arith.mulf %5, %250 : vector<1x128xf32>
    %310 = arith.addf %308, %309 : vector<1x128xf32>
    %cst_46 = arith.constant 0.000000e+00 : f32
    %311 = vector.broadcast %cst_46 : f32 to vector<1x128xf32>
    %312 = arith.subf %311, %310 : vector<1x128xf32>
    %cst_47 = arith.constant 5.000000e-01 : f32
    %313 = vector.broadcast %cst_47 : f32 to vector<1x128xf32>
    %314 = arith.mulf %312, %313 : vector<1x128xf32>
    %cst_48 = arith.constant 5.000000e-01 : f32
    %315 = vector.broadcast %cst_48 : f32 to vector<1x128xf32>
    %316 = arith.addf %314, %315 : vector<1x128xf32>
    %cst_49 = arith.constant 0.000000e+00 : f32
    %317 = vector.broadcast %cst_49 : f32 to vector<1x128xf32>
    %318 = arith.maximumf %316, %317 : vector<1x128xf32>
    %cst_50 = arith.constant 1.000000e+00 : f32
    %319 = arith.subf %cst_50, %244 : f32
    %320 = vector.broadcast %319 : f32 to vector<1x128xf32>
    %321 = arith.mulf %318, %320 : vector<1x128xf32>
    %cst_51 = arith.constant 0.000000e+00 : f32
    %322 = vector.broadcast %cst_51 : f32 to vector<1x128xf32>
    %323 = arith.subf %322, %310 : vector<1x128xf32>
    %cst_52 = arith.constant 0.000000e+00 : f32
    %324 = vector.broadcast %cst_52 : f32 to vector<1x128xf32>
    %325 = arith.maximumf %323, %324 : vector<1x128xf32>
    %326 = vector.broadcast %244 : f32 to vector<1x128xf32>
    %327 = arith.mulf %325, %326 : vector<1x128xf32>
    %328 = arith.addf %321, %327 : vector<1x128xf32>
    %cst_53 = arith.constant 0.000000e+00 : f32
    %329 = vector.broadcast %cst_53 : f32 to vector<1x128xf32>
    %330 = arith.subf %329, %328 : vector<1x128xf32>
    %331 = arith.mulf %330, %6 : vector<1x128xf32>
    %cst_54 = arith.constant 5.000000e-01 : f32
    %332 = vector.broadcast %cst_54 : f32 to vector<1x128xf32>
    %333 = arith.mulf %331, %332 : vector<1x128xf32>
    %334 = arith.addf %223, %333 : vector<1x128xf32>
    %335 = arith.mulf %330, %6 : vector<1x128xf32>
    %cst_55 = arith.constant 5.000000e-01 : f32
    %336 = vector.broadcast %cst_55 : f32 to vector<1x128xf32>
    %337 = arith.mulf %335, %336 : vector<1x128xf32>
    %338 = arith.subf %223, %337 : vector<1x128xf32>
    %339 = vector.broadcast %243 : f32 to vector<1x128xf32>
    %340 = arith.mulf %338, %339 : vector<1x128xf32>
    %cst_56 = arith.constant 0.000000e+00 : f32
    %341 = vector.broadcast %cst_56 : f32 to vector<1x128xf32>
    %342 = arith.subf %341, %340 : vector<1x128xf32>
    %343 = math.exp %342 : vector<1x128xf32>
    %cst_57 = arith.constant 1.000000e+00 : f32
    %344 = vector.broadcast %cst_57 : f32 to vector<1x128xf32>
    %345 = arith.addf %344, %343 : vector<1x128xf32>
    %cst_58 = arith.constant 1.000000e+00 : f32
    %346 = vector.broadcast %cst_58 : f32 to vector<1x128xf32>
    %347 = arith.divf %346, %345 : vector<1x128xf32>
    %348 = vector.broadcast %243 : f32 to vector<1x128xf32>
    %349 = arith.mulf %334, %348 : vector<1x128xf32>
    %cst_59 = arith.constant 0.000000e+00 : f32
    %350 = vector.broadcast %cst_59 : f32 to vector<1x128xf32>
    %351 = arith.subf %350, %349 : vector<1x128xf32>
    %352 = math.exp %351 : vector<1x128xf32>
    %cst_60 = arith.constant 1.000000e+00 : f32
    %353 = vector.broadcast %cst_60 : f32 to vector<1x128xf32>
    %354 = arith.addf %353, %352 : vector<1x128xf32>
    %cst_61 = arith.constant 1.000000e+00 : f32
    %355 = vector.broadcast %cst_61 : f32 to vector<1x128xf32>
    %356 = arith.divf %355, %354 : vector<1x128xf32>
    %357 = arith.subf %347, %356 : vector<1x128xf32>
    %cst_62 = arith.constant 9.99999974E-6 : f32
    %358 = vector.broadcast %cst_62 : f32 to vector<1x128xf32>
    %359 = arith.addf %357, %358 : vector<1x128xf32>
    %cst_63 = arith.constant 9.99999974E-6 : f32
    %360 = vector.broadcast %cst_63 : f32 to vector<1x128xf32>
    %361 = arith.addf %347, %360 : vector<1x128xf32>
    %362 = arith.divf %359, %361 : vector<1x128xf32>
    %cst_64 = arith.constant 0.000000e+00 : f32
    %cst_65 = arith.constant 1.000000e+00 : f32
    %363 = vector.broadcast %cst_64 : f32 to vector<1x128xf32>
    %364 = arith.maximumf %363, %362 : vector<1x128xf32>
    %365 = vector.broadcast %cst_65 : f32 to vector<1x128xf32>
    %366 = arith.minimumf %365, %364 : vector<1x128xf32>
    %c0_66 = arith.constant 0 : index
    %c0_67 = arith.constant 0 : index
    %367 = vector.load %arg4[%c0_66, %c0_67] : memref<16x128xf32, #tpu.memory_space<vmem>>, vector<1x128xf32>
    tpu.vector_store %arg4[%c0_66, %c0_67], %223 {strides = array<i32>} : memref<16x128xf32, #tpu.memory_space<vmem>>, vector<1x128xf32>,
    %c1_68 = arith.constant 1 : index
    %c0_69 = arith.constant 0 : index
    %368 = vector.load %arg4[%c1_68, %c0_69] : memref<16x128xf32, #tpu.memory_space<vmem>>, vector<1x128xf32>
    tpu.vector_store %arg4[%c1_68, %c0_69], %246 {strides = array<i32>} : memref<16x128xf32, #tpu.memory_space<vmem>>, vector<1x128xf32>,
    %c2_70 = arith.constant 2 : index
    %c0_71 = arith.constant 0 : index
    %369 = vector.load %arg4[%c2_70, %c0_71] : memref<16x128xf32, #tpu.memory_space<vmem>>, vector<1x128xf32>
    tpu.vector_store %arg4[%c2_70, %c0_71], %248 {strides = array<i32>} : memref<16x128xf32, #tpu.memory_space<vmem>>, vector<1x128xf32>,
    %c3_72 = arith.constant 3 : index
    %c0_73 = arith.constant 0 : index
    %370 = vector.load %arg4[%c3_72, %c0_73] : memref<16x128xf32, #tpu.memory_space<vmem>>, vector<1x128xf32>
    tpu.vector_store %arg4[%c3_72, %c0_73], %250 {strides = array<i32>} : memref<16x128xf32, #tpu.memory_space<vmem>>, vector<1x128xf32>,
    %c4_74 = arith.constant 4 : index
    %c0_75 = arith.constant 0 : index
    %371 = vector.load %arg4[%c4_74, %c0_75] : memref<16x128xf32, #tpu.memory_space<vmem>>, vector<1x128xf32>
    tpu.vector_store %arg4[%c4_74, %c0_75], %286 {strides = array<i32>} : memref<16x128xf32, #tpu.memory_space<vmem>>, vector<1x128xf32>,
    %c5_76 = arith.constant 5 : index
    %c0_77 = arith.constant 0 : index
    %372 = vector.load %arg4[%c5_76, %c0_77] : memref<16x128xf32, #tpu.memory_space<vmem>>, vector<1x128xf32>
    tpu.vector_store %arg4[%c5_76, %c0_77], %287 {strides = array<i32>} : memref<16x128xf32, #tpu.memory_space<vmem>>, vector<1x128xf32>,
    %c6_78 = arith.constant 6 : index
    %c0_79 = arith.constant 0 : index
    %373 = vector.load %arg4[%c6_78, %c0_79] : memref<16x128xf32, #tpu.memory_space<vmem>>, vector<1x128xf32>
    tpu.vector_store %arg4[%c6_78, %c0_79], %288 {strides = array<i32>} : memref<16x128xf32, #tpu.memory_space<vmem>>, vector<1x128xf32>,
    %c7 = arith.constant 7 : index
    %c0_80 = arith.constant 0 : index
    %374 = vector.load %arg4[%c7, %c0_80] : memref<16x128xf32, #tpu.memory_space<vmem>>, vector<1x128xf32>
    tpu.vector_store %arg4[%c7, %c0_80], %259 {strides = array<i32>} : memref<16x128xf32, #tpu.memory_space<vmem>>, vector<1x128xf32>,
    %c8 = arith.constant 8 : index
    %c0_81 = arith.constant 0 : index
    %375 = vector.load %arg4[%c8, %c0_81] : memref<16x128xf32, #tpu.memory_space<vmem>>, vector<1x128xf32>
    tpu.vector_store %arg4[%c8, %c0_81], %268 {strides = array<i32>} : memref<16x128xf32, #tpu.memory_space<vmem>>, vector<1x128xf32>,
    %c9 = arith.constant 9 : index
    %c0_82 = arith.constant 0 : index
    %376 = vector.load %arg4[%c9, %c0_82] : memref<16x128xf32, #tpu.memory_space<vmem>>, vector<1x128xf32>
    tpu.vector_store %arg4[%c9, %c0_82], %277 {strides = array<i32>} : memref<16x128xf32, #tpu.memory_space<vmem>>, vector<1x128xf32>,
    %c10 = arith.constant 10 : index
    %c0_83 = arith.constant 0 : index
    %377 = vector.load %arg4[%c10, %c0_83] : memref<16x128xf32, #tpu.memory_space<vmem>>, vector<1x128xf32>
    tpu.vector_store %arg4[%c10, %c0_83], %305 {strides = array<i32>} : memref<16x128xf32, #tpu.memory_space<vmem>>, vector<1x128xf32>,
    %c11 = arith.constant 11 : index
    %c0_84 = arith.constant 0 : index
    %378 = vector.load %arg4[%c11, %c0_84] : memref<16x128xf32, #tpu.memory_space<vmem>>, vector<1x128xf32>
    tpu.vector_store %arg4[%c11, %c0_84], %366 {strides = array<i32>} : memref<16x128xf32, #tpu.memory_space<vmem>>, vector<1x128xf32>,
    %cst_85 = arith.constant 0.000000e+00 : f32
    %379 = vector.broadcast %cst_85 : f32 to vector<4x128xf32>
    %c12 = arith.constant 12 : index
    %c0_86 = arith.constant 0 : index
    %380 = vector.load %arg4[%c12, %c0_86] : memref<16x128xf32, #tpu.memory_space<vmem>>, vector<4x128xf32>
    tpu.vector_store %arg4[%c12, %c0_86], %379 {strides = array<i32>} : memref<16x128xf32, #tpu.memory_space<vmem>>, vector<4x128xf32>,
    return
  }
  func.func @transform_0(%arg0: i32, %arg1: memref<8xf32, #tpu.memory_space<smem>>) -> (i32, i32) {
    %c0_i32 = arith.constant 0 : i32
    %c0_i32_0 = arith.constant 0 : i32
    return %c0_i32, %arg0 : i32, i32
  }
  func.func @transform_1(%arg0: i32, %arg1: memref<8xf32, #tpu.memory_space<smem>>) -> (i32, i32) {
    %c0_i32 = arith.constant 0 : i32
    %c0_i32_0 = arith.constant 0 : i32
    %c0_i32_1 = arith.constant 0 : i32
    return %c0_i32, %c0_i32_0 : i32, i32
  }
  func.func @transform_2(%arg0: i32, %arg1: memref<8xf32, #tpu.memory_space<smem>>) -> (i32, i32) {
    %c0_i32 = arith.constant 0 : i32
    %c0_i32_0 = arith.constant 0 : i32
    return %c0_i32, %arg0 : i32, i32
  }
}

</mosaic_0001>

<llo_original>
// kernel: tpu_custom_call.1
$region0: #{tpu_custom_call.1}
  #allocation0 [shape = 'u32[]', space=smem, size = 0x4, offset = 0x4, fixed_abs, tag = 'smem constant byte address 0x4 - core index']
  #allocation1 [shape = 'u32[144,128]{1,0:T(1,128)}', space=vmem, size = 0x12000, scoped, tag = 'internal scratch']
  #allocation2 [shape = 's32[1]{0}', space=sflag, size = 0x4, scoped, tag = 'scoped memory for tpu_custom_call.1']
  #allocation3 [shape = 'u8[512]{0}', space=smem, size = 0x200, scoped, tag = 'prefetched SMEM operand 0']
  %s0 = inlined_call_operand.hbm [shape: f32[8], index: 0, kind: input, shape index: {}]
  %s1 = inlined_call_operand.hbm [shape: f32[8,128], index: 1, kind: input, shape index: {}]
  %s2 = inlined_call_operand.hbm [shape: f32[32,1024], index: 2, kind: input, shape index: {}]
  %s3 = inlined_call_operand.hbm [shape: f32[16,128], index: 3, kind: output, shape index: {}]
  %s4 = sld [smem:[#allocation0]]
  $region26: #{tpu_custom_call.1} parent=0
    _
  %s6 = ssub.s32 1, %s4
  %s7 = scalar_select 0, %s6, %s4
  %9 = dma.hbm_to_smem %s0, 16, [#allocation3], [#allocation2]
  %10 = dma.done [#allocation2], 16
  %11 = sfence
  $region1: #{tpu_custom_call.1} parent=0
    #allocation4 [shape = 'u8[4096]{0}', space=vmem, size = 0x1000, scoped, tag = 'input window, operand 1, single buffered']
    #allocation5 [shape = 's32[1]{0}', space=sflag, size = 0x4, scoped, tag = 'scoped memory for tpu_custom_call.1']
    #allocation6 [shape = 's32[1]{0}', space=sflag, size = 0x4, scoped, tag = 'scoped memory for tpu_custom_call.1']
    #allocation7 [shape = 'u8[131072]{0}', space=vmem, size = 0x20000, scoped, tag = 'input window, operand 2, single buffered']
    #allocation8 [shape = 's32[1]{0}', space=sflag, size = 0x4, scoped, tag = 'scoped memory for tpu_custom_call.1']
    #allocation9 [shape = 'u8[8192]{0}', space=vmem, size = 0x2000, scoped, tag = 'output window, operand 0, single buffered']
    %12 = vsyncpa [#allocation5], 0
    %13 = vsyncpa [#allocation8], 0
    %14 = vsyncpa [#allocation6], 0
    // Predicated region
    $region2: #{tpu_custom_call.1} parent=1 // pred_check
      _
    $region3: #{tpu_custom_call.1} parent=1 // pred_check_branch
      %16 = sbr.rel (0) target = $region5
    $region4: #{tpu_custom_call.1} parent=1 // pred_region
      %s18 = ssub.s32 128, 128
      %19 = vsyncadd [#allocation5], %s18
      %s21 = sshll.u32 [#allocation4], 4
      %s22 = int_to_ptr.vmem [resolvable:$true] %s21
      %24 = dma.hbm_to_vmem [thread:$0]  %s1, 128, %s22, [#allocation5]
    $region5: #{tpu_custom_call.1} parent=1 // pred_fallthru
      _
    // Predicated region
    $region6: #{tpu_custom_call.1} parent=1 // pred_check
      _
    $region7: #{tpu_custom_call.1} parent=1 // pred_check_branch
      %26 = sbr.rel (0) target = $region9
    $region8: #{tpu_custom_call.1} parent=1 // pred_region
      %s28 = ssub.s32 4096, 4096
      %29 = vsyncadd [#allocation8], %s28
      %s30 = sshll.u32 [#allocation7], 4
      %s31 = int_to_ptr.vmem [resolvable:$true] %s30
      %36 = dma.hbm_to_vmem [thread:$0]  %s2, 4096, %s31, [#allocation8], 1024, 1024, 64
    $region9: #{tpu_custom_call.1} parent=1 // pred_fallthru
      _
    // Predicated region
    $region10: #{tpu_custom_call.1} parent=1 // pred_check
      _
    $region11: #{tpu_custom_call.1} parent=1 // pred_check_branch
      %38 = sbr.rel (0) target = $region13
    $region12: #{tpu_custom_call.1} parent=1 // pred_region
      %39 = dma.done [#allocation5], 128
    $region13: #{tpu_custom_call.1} parent=1 // pred_fallthru
      _
    // Predicated region
    $region14: #{tpu_custom_call.1} parent=1 // pred_check
      _
    $region15: #{tpu_custom_call.1} parent=1 // pred_check_branch
      %41 = sbr.rel (0) target = $region17
    $region16: #{tpu_custom_call.1} parent=1 // pred_region
      %42 = dma.done [#allocation8], 4096
    $region17: #{tpu_custom_call.1} parent=1 // pred_fallthru
      _
    %v43 = vld [vmem:[#allocation4] sm:$0x1]
    %v44 = vld [vmem:[#allocation4 + $0x1] sm:$0x1]
    %v45 = vld [vmem:[#allocation4 + $0x2] sm:$0x1]
    %v46 = vld [vmem:[#allocation4 + $0x3] sm:$0x1]
    %v47 = vld [vmem:[#allocation4 + $0x4] sm:$0x1]
    %v48 = vld [vmem:[#allocation4 + $0x5] sm:$0x1]
    %v49 = vld [vmem:[#allocation4 + $0x6] sm:$0x1]
    %v50 = vfloor.f32 %v43
    %v51 = vfloor.f32 %v44
    %v52 = vfloor.f32 %v45
    %v53 = vsub.f32 %v43, %v50
    %v54 = vsub.f32 %v44, %v51
    %v55 = vsub.f32 %v45, %v52
    %v56 = vcvt.f32.s32.to.zero.pseudo %v50
    %v57 = vcvt.f32.s32.to.zero.pseudo %v51
    %v58 = vcvt.f32.s32.to.zero.pseudo %v52
    %vm59 = vcmp.ge.s32.totalorder %v56, 4294967295
    %vm60 = vcmp.le.s32.totalorder %v56, 7
    %vm61 = vmand %vm59, %vm60
    %vm62 = vcmp.ge.s32.totalorder %v57, 4294967295
    %vm63 = vmand %vm61, %vm62
    %vm64 = vcmp.le.s32.totalorder %v57, 7
    %vm65 = vmand %vm63, %vm64
    %vm66 = vcmp.ge.s32.totalorder %v58, 4294967295
    %vm67 = vmand %vm65, %vm66
    %vm68 = vcmp.le.s32.totalorder %v58, 7
    %vm69 = vmand %vm67, %vm68
    %v70 = vadd.s32 %v58, 1
    %v71 = vmul.u32 %v70, 100
    %v72 = vadd.s32 %v57, 1
    %v73 = vmul.u32 %v72, 10
    %v74 = vadd.s32 %v71, %v73
    %v75 = vadd.s32 %v56, 1
    %v76 = vadd.s32 %v74, %v75
    %v77 = vsel %vm69, %v76, 4294967295
    %v78 = vlaneseq
    %v79 = vshrl.u32 %v78, 7
    %v80 = vadd.s32 %v79, 8
    %v81 = vadd.s32 %v79, 16
    %v82 = vadd.s32 %v79, 24
    %v83 = vadd.s32 %v79, 32
    %v84 = vadd.s32 %v79, 40
    %v85 = vadd.s32 %v79, 48
    %v86 = vadd.s32 %v79, 56
    %v87 = vadd.s32 %v79, 64
    %v88 = vadd.s32 %v79, 72
    %v89 = vadd.s32 %v79, 80
    %v90 = vadd.s32 %v79, 88
    %v91 = vadd.s32 %v79, 96
    %v92 = vadd.s32 %v79, 104
    %v93 = vadd.s32 %v79, 112
    %v94 = vadd.s32 %v79, 120
    %v95 = vadd.s32 %v79, 128
    %v96 = vadd.s32 %v79, 136
    %v97 = vadd.s32 %v79, 144
    %v98 = vadd.s32 %v79, 152
    %v99 = vadd.s32 %v79, 160
    %v100 = vadd.s32 %v79, 168
    %v101 = vadd.s32 %v79, 176
    %v102 = vadd.s32 %v79, 184
    %v103 = vadd.s32 %v79, 192
    %v104 = vadd.s32 %v79, 200
    %v105 = vadd.s32 %v79, 208
    %v106 = vadd.s32 %v79, 216
    %v107 = vadd.s32 %v79, 224
    %v108 = vadd.s32 %v79, 232
    %v109 = vadd.s32 %v79, 240
    %v110 = vadd.s32 %v79, 248
    %v111 = vadd.s32 %v79, 256
    %v112 = vadd.s32 %v79, 264
    %v113 = vadd.s32 %v79, 272
    %v114 = vadd.s32 %v79, 280
    %v115 = vadd.s32 %v79, 288
    %v116 = vadd.s32 %v79, 296
    %v117 = vadd.s32 %v79, 304
    %v118 = vadd.s32 %v79, 312
    %v119 = vadd.s32 %v79, 320
    %v120 = vadd.s32 %v79, 328
    %v121 = vadd.s32 %v79, 336
    %v122 = vadd.s32 %v79, 344
    %v123 = vadd.s32 %v79, 352
    %v124 = vadd.s32 %v79, 360
    %v125 = vadd.s32 %v79, 368
    %v126 = vadd.s32 %v79, 376
    %v127 = vadd.s32 %v79, 384
    %v128 = vadd.s32 %v79, 392
    %v129 = vadd.s32 %v79, 400
    %v130 = vadd.s32 %v79, 408
    %v131 = vadd.s32 %v79, 416
    %v132 = vadd.s32 %v79, 424
    %v133 = vadd.s32 %v79, 432
    %v134 = vadd.s32 %v79, 440
    %v135 = vadd.s32 %v79, 448
    %v136 = vadd.s32 %v79, 456
    %v137 = vadd.s32 %v79, 464
    %v138 = vadd.s32 %v79, 472
    %v139 = vadd.s32 %v79, 480
    %v140 = vadd.s32 %v79, 488
    %v141 = vadd.s32 %v79, 496
    %v142 = vadd.s32 %v79, 504
    %v143 = vadd.s32 %v79, 512
    %v144 = vadd.s32 %v79, 520
    %v145 = vadd.s32 %v79, 528
    %v146 = vadd.s32 %v79, 536
    %v147 = vadd.s32 %v79, 544
    %v148 = vadd.s32 %v79, 552
    %v149 = vadd.s32 %v79, 560
    %v150 = vadd.s32 %v79, 568
    %v151 = vadd.s32 %v79, 576
    %v152 = vadd.s32 %v79, 584
    %v153 = vadd.s32 %v79, 592
    %v154 = vadd.s32 %v79, 600
    %v155 = vadd.s32 %v79, 608
    %v156 = vadd.s32 %v79, 616
    %v157 = vadd.s32 %v79, 624
    %v158 = vadd.s32 %v79, 632
    %v159 = vadd.s32 %v79, 640
    %v160 = vadd.s32 %v79, 648
    %v161 = vadd.s32 %v79, 656
    %v162 = vadd.s32 %v79, 664
    %v163 = vadd.s32 %v79, 672
    %v164 = vadd.s32 %v79, 680
    %v165 = vadd.s32 %v79, 688
    %v166 = vadd.s32 %v79, 696
    %v167 = vadd.s32 %v79, 704
    %v168 = vadd.s32 %v79, 712
    %v169 = vadd.s32 %v79, 720
    %v170 = vadd.s32 %v79, 728
    %v171 = vadd.s32 %v79, 736
    %v172 = vadd.s32 %v79, 744
    %v173 = vadd.s32 %v79, 752
    %v174 = vadd.s32 %v79, 760
    %v175 = vadd.s32 %v79, 768
    %v176 = vadd.s32 %v79, 776
    %v177 = vadd.s32 %v79, 784
    %v178 = vadd.s32 %v79, 792
    %v179 = vadd.s32 %v79, 800
    %v180 = vadd.s32 %v79, 808
    %v181 = vadd.s32 %v79, 816
    %v182 = vadd.s32 %v79, 824
    %v183 = vadd.s32 %v79, 832
    %v184 = vadd.s32 %v79, 840
    %v185 = vadd.s32 %v79, 848
    %v186 = vadd.s32 %v79, 856
    %v187 = vadd.s32 %v79, 864
    %v188 = vadd.s32 %v79, 872
    %v189 = vadd.s32 %v79, 880
    %v190 = vadd.s32 %v79, 888
    %v191 = vadd.s32 %v79, 896
    %v192 = vadd.s32 %v79, 904
    %v193 = vadd.s32 %v79, 912
    %v194 = vadd.s32 %v79, 920
    %v195 = vadd.s32 %v79, 928
    %v196 = vadd.s32 %v79, 936
    %v197 = vadd.s32 %v79, 944
    %v198 = vadd.s32 %v79, 952
    %v199 = vadd.s32 %v79, 960
    %v200 = vadd.s32 %v79, 968
    %v201 = vadd.s32 %v79, 976
    %v202 = vadd.s32 %v79, 984
    %v203 = vadd.s32 %v79, 992
    %v204 = vadd.s32 %v79, 1000
    %v205 = vadd.s32 %v79, 1008
    %v206 = vadd.s32 %v79, 1016
    %v207 = vlaneseq
    %v208 = vshrl.u32 %v207, 7
    %v209 = vsub.s32 0, %v208
    %v210 = vrot.slane %v77, %v209
    %vm211 = vcmp.eq.s32.totalorder %v79, %v210
    %vm212 = vcmp.eq.s32.totalorder %v80, %v210
    %vm213 = vcmp.eq.s32.totalorder %v81, %v210
    %vm214 = vcmp.eq.s32.totalorder %v82, %v210
    %vm215 = vcmp.eq.s32.totalorder %v83, %v210
    %vm216 = vcmp.eq.s32.totalorder %v84, %v210
    %vm217 = vcmp.eq.s32.totalorder %v85, %v210
    %vm218 = vcmp.eq.s32.totalorder %v86, %v210
    %vm219 = vcmp.eq.s32.totalorder %v87, %v210
    %vm220 = vcmp.eq.s32.totalorder %v88, %v210
    %vm221 = vcmp.eq.s32.totalorder %v89, %v210
    %vm222 = vcmp.eq.s32.totalorder %v90, %v210
    %vm223 = vcmp.eq.s32.totalorder %v91, %v210
    %vm224 = vcmp.eq.s32.totalorder %v92, %v210
    %vm225 = vcmp.eq.s32.totalorder %v93, %v210
    %vm226 = vcmp.eq.s32.totalorder %v94, %v210
    %vm227 = vcmp.eq.s32.totalorder %v95, %v210
    %vm228 = vcmp.eq.s32.totalorder %v96, %v210
    %vm229 = vcmp.eq.s32.totalorder %v97, %v210
    %vm230 = vcmp.eq.s32.totalorder %v98, %v210
    %vm231 = vcmp.eq.s32.totalorder %v99, %v210
    %vm232 = vcmp.eq.s32.totalorder %v100, %v210
    %vm233 = vcmp.eq.s32.totalorder %v101, %v210
    %vm234 = vcmp.eq.s32.totalorder %v102, %v210
    %vm235 = vcmp.eq.s32.totalorder %v103, %v210
    %vm236 = vcmp.eq.s32.totalorder %v104, %v210
    %vm237 = vcmp.eq.s32.totalorder %v105, %v210
    %vm238 = vcmp.eq.s32.totalorder %v106, %v210
    %vm239 = vcmp.eq.s32.totalorder %v107, %v210
    %vm240 = vcmp.eq.s32.totalorder %v108, %v210
    %vm241 = vcmp.eq.s32.totalorder %v109, %v210
    %vm242 = vcmp.eq.s32.totalorder %v110, %v210
    %vm243 = vcmp.eq.s32.totalorder %v111, %v210
    %vm244 = vcmp.eq.s32.totalorder %v112, %v210
    %vm245 = vcmp.eq.s32.totalorder %v113, %v210
    %vm246 = vcmp.eq.s32.totalorder %v114, %v210
    %vm247 = vcmp.eq.s32.totalorder %v115, %v210
    %vm248 = vcmp.eq.s32.totalorder %v116, %v210
    %vm249 = vcmp.eq.s32.totalorder %v117, %v210
    %vm250 = vcmp.eq.s32.totalorder %v118, %v210
    %vm251 = vcmp.eq.s32.totalorder %v119, %v210
    %vm252 = vcmp.eq.s32.totalorder %v120, %v210
    %vm253 = vcmp.eq.s32.totalorder %v121, %v210
    %vm254 = vcmp.eq.s32.totalorder %v122, %v210
    %vm255 = vcmp.eq.s32.totalorder %v123, %v210
    %vm256 = vcmp.eq.s32.totalorder %v124, %v210
    %vm257 = vcmp.eq.s32.totalorder %v125, %v210
    %vm258 = vcmp.eq.s32.totalorder %v126, %v210
    %vm259 = vcmp.eq.s32.totalorder %v127, %v210
    %vm260 = vcmp.eq.s32.totalorder %v128, %v210
    %vm261 = vcmp.eq.s32.totalorder %v129, %v210
    %vm262 = vcmp.eq.s32.totalorder %v130, %v210
    %vm263 = vcmp.eq.s32.totalorder %v131, %v210
    %vm264 = vcmp.eq.s32.totalorder %v132, %v210
    %vm265 = vcmp.eq.s32.totalorder %v133, %v210
    %vm266 = vcmp.eq.s32.totalorder %v134, %v210
    %vm267 = vcmp.eq.s32.totalorder %v135, %v210
    %vm268 = vcmp.eq.s32.totalorder %v136, %v210
    %vm269 = vcmp.eq.s32.totalorder %v137, %v210
    %vm270 = vcmp.eq.s32.totalorder %v138, %v210
    %vm271 = vcmp.eq.s32.totalorder %v139, %v210
    %vm272 = vcmp.eq.s32.totalorder %v140, %v210
    %vm273 = vcmp.eq.s32.totalorder %v141, %v210
    %vm274 = vcmp.eq.s32.totalorder %v142, %v210
    %vm275 = vcmp.eq.s32.totalorder %v143, %v210
    %vm276 = vcmp.eq.s32.totalorder %v144, %v210
    %vm277 = vcmp.eq.s32.totalorder %v145, %v210
    %vm278 = vcmp.eq.s32.totalorder %v146, %v210
    %vm279 = vcmp.eq.s32.totalorder %v147, %v210
    %vm280 = vcmp.eq.s32.totalorder %v148, %v210
    %vm281 = vcmp.eq.s32.totalorder %v149, %v210
    %vm282 = vcmp.eq.s32.totalorder %v150, %v210
    %vm283 = vcmp.eq.s32.totalorder %v151, %v210
    %vm284 = vcmp.eq.s32.totalorder %v152, %v210
    %vm285 = vcmp.eq.s32.totalorder %v153, %v210
    %vm286 = vcmp.eq.s32.totalorder %v154, %v210
    %vm287 = vcmp.eq.s32.totalorder %v155, %v210
    %vm288 = vcmp.eq.s32.totalorder %v156, %v210
    %vm289 = vcmp.eq.s32.totalorder %v157, %v210
    %vm290 = vcmp.eq.s32.totalorder %v158, %v210
    %vm291 = vcmp.eq.s32.totalorder %v159, %v210
    %vm292 = vcmp.eq.s32.totalorder %v160, %v210
    %vm293 = vcmp.eq.s32.totalorder %v161, %v210
    %vm294 = vcmp.eq.s32.totalorder %v162, %v210
    %vm295 = vcmp.eq.s32.totalorder %v163, %v210
    %vm296 = vcmp.eq.s32.totalorder %v164, %v210
    %vm297 = vcmp.eq.s32.totalorder %v165, %v210
    %vm298 = vcmp.eq.s32.totalorder %v166, %v210
    %vm299 = vcmp.eq.s32.totalorder %v167, %v210
    %vm300 = vcmp.eq.s32.totalorder %v168, %v210
    %vm301 = vcmp.eq.s32.totalorder %v169, %v210
    %vm302 = vcmp.eq.s32.totalorder %v170, %v210
    %vm303 = vcmp.eq.s32.totalorder %v171, %v210
    %vm304 = vcmp.eq.s32.totalorder %v172, %v210
    %vm305 = vcmp.eq.s32.totalorder %v173, %v210
    %vm306 = vcmp.eq.s32.totalorder %v174, %v210
    %vm307 = vcmp.eq.s32.totalorder %v175, %v210
    %vm308 = vcmp.eq.s32.totalorder %v176, %v210
    %vm309 = vcmp.eq.s32.totalorder %v177, %v210
    %vm310 = vcmp.eq.s32.totalorder %v178, %v210
    %vm311 = vcmp.eq.s32.totalorder %v179, %v210
    %vm312 = vcmp.eq.s32.totalorder %v180, %v210
    %vm313 = vcmp.eq.s32.totalorder %v181, %v210
    %vm314 = vcmp.eq.s32.totalorder %v182, %v210
    %vm315 = vcmp.eq.s32.totalorder %v183, %v210
    %vm316 = vcmp.eq.s32.totalorder %v184, %v210
    %vm317 = vcmp.eq.s32.totalorder %v185, %v210
    %vm318 = vcmp.eq.s32.totalorder %v186, %v210
    %vm319 = vcmp.eq.s32.totalorder %v187, %v210
    %vm320 = vcmp.eq.s32.totalorder %v188, %v210
    %vm321 = vcmp.eq.s32.totalorder %v189, %v210
    %vm322 = vcmp.eq.s32.totalorder %v190, %v210
    %vm323 = vcmp.eq.s32.totalorder %v191, %v210
    %vm324 = vcmp.eq.s32.totalorder %v192, %v210
    %vm325 = vcmp.eq.s32.totalorder %v193, %v210
    %vm326 = vcmp.eq.s32.totalorder %v194, %v210
    %vm327 = vcmp.eq.s32.totalorder %v195, %v210
    %vm328 = vcmp.eq.s32.totalorder %v196, %v210
    %vm329 = vcmp.eq.s32.totalorder %v197, %v210
    %vm330 = vcmp.eq.s32.totalorder %v198, %v210
    %vm331 = vcmp.eq.s32.totalorder %v199, %v210
    %vm332 = vcmp.eq.s32.totalorder %v200, %v210
    %vm333 = vcmp.eq.s32.totalorder %v201, %v210
    %vm334 = vcmp.eq.s32.totalorder %v202, %v210
    %vm335 = vcmp.eq.s32.totalorder %v203, %v210
    %vm336 = vcmp.eq.s32.totalorder %v204, %v210
    %vm337 = vcmp.eq.s32.totalorder %v205, %v210
    %vm338 = vcmp.eq.s32.totalorder %v206, %v210
    %v339 = vsel %vm211, 1.0, 0.0
    %v340 = vsel %vm212, 1.0, 0.0
    %v341 = vsel %vm213, 1.0, 0.0
    %v342 = vsel %vm214, 1.0, 0.0
    %v343 = vsel %vm215, 1.0, 0.0
    %v344 = vsel %vm216, 1.0, 0.0
    %v345 = vsel %vm217, 1.0, 0.0
    %v346 = vsel %vm218, 1.0, 0.0
    %v347 = vsel %vm219, 1.0, 0.0
    %v348 = vsel %vm220, 1.0, 0.0
    %v349 = vsel %vm221, 1.0, 0.0
    %v350 = vsel %vm222, 1.0, 0.0
    %v351 = vsel %vm223, 1.0, 0.0
    %v352 = vsel %vm224, 1.0, 0.0
    %v353 = vsel %vm225, 1.0, 0.0
    %v354 = vsel %vm226, 1.0, 0.0
    %v355 = vsel %vm227, 1.0, 0.0
    %v356 = vsel %vm228, 1.0, 0.0
    %v357 = vsel %vm229, 1.0, 0.0
    %v358 = vsel %vm230, 1.0, 0.0
    %v359 = vsel %vm231, 1.0, 0.0
    %v360 = vsel %vm232, 1.0, 0.0
    %v361 = vsel %vm233, 1.0, 0.0
    %v362 = vsel %vm234, 1.0, 0.0
    %v363 = vsel %vm235, 1.0, 0.0
    %v364 = vsel %vm236, 1.0, 0.0
    %v365 = vsel %vm237, 1.0, 0.0
    %v366 = vsel %vm238, 1.0, 0.0
    %v367 = vsel %vm239, 1.0, 0.0
    %v368 = vsel %vm240, 1.0, 0.0
    %v369 = vsel %vm241, 1.0, 0.0
    %v370 = vsel %vm242, 1.0, 0.0
    %v371 = vsel %vm243, 1.0, 0.0
    %v372 = vsel %vm244, 1.0, 0.0
    %v373 = vsel %vm245, 1.0, 0.0
    %v374 = vsel %vm246, 1.0, 0.0
    %v375 = vsel %vm247, 1.0, 0.0
    %v376 = vsel %vm248, 1.0, 0.0
    %v377 = vsel %vm249, 1.0, 0.0
    %v378 = vsel %vm250, 1.0, 0.0
    %v379 = vsel %vm251, 1.0, 0.0
    %v380 = vsel %vm252, 1.0, 0.0
    %v381 = vsel %vm253, 1.0, 0.0
    %v382 = vsel %vm254, 1.0, 0.0
    %v383 = vsel %vm255, 1.0, 0.0
    %v384 = vsel %vm256, 1.0, 0.0
    %v385 = vsel %vm257, 1.0, 0.0
    %v386 = vsel %vm258, 1.0, 0.0
    %v387 = vsel %vm259, 1.0, 0.0
    %v388 = vsel %vm260, 1.0, 0.0
    %v389 = vsel %vm261, 1.0, 0.0
    %v390 = vsel %vm262, 1.0, 0.0
    %v391 = vsel %vm263, 1.0, 0.0
    %v392 = vsel %vm264, 1.0, 0.0
    %v393 = vsel %vm265, 1.0, 0.0
    %v394 = vsel %vm266, 1.0, 0.0
    %v395 = vsel %vm267, 1.0, 0.0
    %v396 = vsel %vm268, 1.0, 0.0
    %v397 = vsel %vm269, 1.0, 0.0
    %v398 = vsel %vm270, 1.0, 0.0
    %v399 = vsel %vm271, 1.0, 0.0
    %v400 = vsel %vm272, 1.0, 0.0
    %v401 = vsel %vm273, 1.0, 0.0
    %v402 = vsel %vm274, 1.0, 0.0
    %v403 = vsel %vm275, 1.0, 0.0
    %v404 = vsel %vm276, 1.0, 0.0
    %v405 = vsel %vm277, 1.0, 0.0
    %v406 = vsel %vm278, 1.0, 0.0
    %v407 = vsel %vm279, 1.0, 0.0
    %v408 = vsel %vm280, 1.0, 0.0
    %v409 = vsel %vm281, 1.0, 0.0
    %v410 = vsel %vm282, 1.0, 0.0
    %v411 = vsel %vm283, 1.0, 0.0
    %v412 = vsel %vm284, 1.0, 0.0
    %v413 = vsel %vm285, 1.0, 0.0
    %v414 = vsel %vm286, 1.0, 0.0
    %v415 = vsel %vm287, 1.0, 0.0
    %v416 = vsel %vm288, 1.0, 0.0
    %v417 = vsel %vm289, 1.0, 0.0
    %v418 = vsel %vm290, 1.0, 0.0
    %v419 = vsel %vm291, 1.0, 0.0
    %v420 = vsel %vm292, 1.0, 0.0
    %v421 = vsel %vm293, 1.0, 0.0
    %v422 = vsel %vm294, 1.0, 0.0
    %v423 = vsel %vm295, 1.0, 0.0
    %v424 = vsel %vm296, 1.0, 0.0
    %v425 = vsel %vm297, 1.0, 0.0
    %v426 = vsel %vm298, 1.0, 0.0
    %v427 = vsel %vm299, 1.0, 0.0
    %v428 = vsel %vm300, 1.0, 0.0
    %v429 = vsel %vm301, 1.0, 0.0
    %v430 = vsel %vm302, 1.0, 0.0
    %v431 = vsel %vm303, 1.0, 0.0
    %v432 = vsel %vm304, 1.0, 0.0
    %v433 = vsel %vm305, 1.0, 0.0
    %v434 = vsel %vm306, 1.0, 0.0
    %v435 = vsel %vm307, 1.0, 0.0
    %v436 = vsel %vm308, 1.0, 0.0
    %v437 = vsel %vm309, 1.0, 0.0
    %v438 = vsel %vm310, 1.0, 0.0
    %v439 = vsel %vm311, 1.0, 0.0
    %v440 = vsel %vm312, 1.0, 0.0
    %v441 = vsel %vm313, 1.0, 0.0
    %v442 = vsel %vm314, 1.0, 0.0
    %v443 = vsel %vm315, 1.0, 0.0
    %v444 = vsel %vm316, 1.0, 0.0
    %v445 = vsel %vm317, 1.0, 0.0
    %v446 = vsel %vm318, 1.0, 0.0
    %v447 = vsel %vm319, 1.0, 0.0
    %v448 = vsel %vm320, 1.0, 0.0
    %v449 = vsel %vm321, 1.0, 0.0
    %v450 = vsel %vm322, 1.0, 0.0
    %v451 = vsel %vm323, 1.0, 0.0
    %v452 = vsel %vm324, 1.0, 0.0
    %v453 = vsel %vm325, 1.0, 0.0
    %v454 = vsel %vm326, 1.0, 0.0
    %v455 = vsel %vm327, 1.0, 0.0
    %v456 = vsel %vm328, 1.0, 0.0
    %v457 = vsel %vm329, 1.0, 0.0
    %v458 = vsel %vm330, 1.0, 0.0
    %v459 = vsel %vm331, 1.0, 0.0
    %v460 = vsel %vm332, 1.0, 0.0
    %v461 = vsel %vm333, 1.0, 0.0
    %v462 = vsel %vm334, 1.0, 0.0
    %v463 = vsel %vm335, 1.0, 0.0
    %v464 = vsel %vm336, 1.0, 0.0
    %v465 = vsel %vm337, 1.0, 0.0
    %v466 = vsel %vm338, 1.0, 0.0
    %v467 = vld [vmem:[#allocation7] sm:$0xff]
    %v468 = vld [vmem:[#allocation7 + $0x8] sm:$0xff]
    %v469 = vld [vmem:[#allocation7 + $0x10] sm:$0xff]
    %v470 = vld [vmem:[#allocation7 + $0x18] sm:$0xff]
    %v471 = vld [vmem:[#allocation7 + $0x20] sm:$0xff]
    %v472 = vld [vmem:[#allocation7 + $0x28] sm:$0xff]
    %v473 = vld [vmem:[#allocation7 + $0x30] sm:$0xff]
    %v474 = vld [vmem:[#allocation7 + $0x38] sm:$0xff]
    %v475 = vld [vmem:[#allocation7 + $0x40] sm:$0xff]
    %v476 = vld [vmem:[#allocation7 + $0x48] sm:$0xff]
    %v477 = vld [vmem:[#allocation7 + $0x50] sm:$0xff]
    %v478 = vld [vmem:[#allocation7 + $0x58] sm:$0xff]
    %v479 = vld [vmem:[#allocation7 + $0x60] sm:$0xff]
    %v480 = vld [vmem:[#allocation7 + $0x68] sm:$0xff]
    %v481 = vld [vmem:[#allocation7 + $0x70] sm:$0xff]
    %v482 = vld [vmem:[#allocation7 + $0x78] sm:$0xff]
    %v483 = vld [vmem:[#allocation7 + $0x80] sm:$0xff]
    %v484 = vld [vmem:[#allocation7 + $0x88] sm:$0xff]
    %v485 = vld [vmem:[#allocation7 + $0x90] sm:$0xff]
    %v486 = vld [vmem:[#allocation7 + $0x98] sm:$0xff]
    %v487 = vld [vmem:[#allocation7 + $0xa0] sm:$0xff]
    %v488 = vld [vmem:[#allocation7 + $0xa8] sm:$0xff]
    %v489 = vld [vmem:[#allocation7 + $0xb0] sm:$0xff]
    %v490 = vld [vmem:[#allocation7 + $0xb8] sm:$0xff]
    %v491 = vld [vmem:[#allocation7 + $0xc0] sm:$0xff]
    %v492 = vld [vmem:[#allocation7 + $0xc8] sm:$0xff]
    %v493 = vld [vmem:[#allocation7 + $0xd0] sm:$0xff]
    %v494 = vld [vmem:[#allocation7 + $0xd8] sm:$0xff]
    %v495 = vld [vmem:[#allocation7 + $0xe0] sm:$0xff]
    %v496 = vld [vmem:[#allocation7 + $0xe8] sm:$0xff]
    %v497 = vld [vmem:[#allocation7 + $0xf0] sm:$0xff]
    %v498 = vld [vmem:[#allocation7 + $0xf8] sm:$0xff]
    %499 = vmatprep.subr.mxu0 0.0
    %500 = vmatpush1.msra.mxu0 %v339
    %501 = vmatprep.subr.mxu0 0.0
    %502 = vmatpush1.msra.mxu0 %v340
    %503 = vmatprep.subr.mxu0 0.0
    %504 = vmatpush1.msra.mxu0 %v341
    %505 = vmatprep.subr.mxu0 0.0
    %506 = vmatpush1.msra.mxu0 %v342
    %507 = vmatprep.subr.mxu0 0.0
    %508 = vmatpush1.msra.mxu0 %v343
    %509 = vmatprep.subr.mxu0 0.0
    %510 = vmatpush1.msra.mxu0 %v344
    %511 = vmatprep.subr.mxu0 0.0
    %512 = vmatpush1.msra.mxu0 %v345
    %513 = vmatprep.subr.mxu0 0.0
    %514 = vmatpush1.msra.mxu0 %v346
    %515 = vmatprep.subr.mxu0 0.0
    %516 = vmatpush1.msra.mxu0 %v347
    %517 = vmatprep.subr.mxu0 0.0
    %518 = vmatpush1.msra.mxu0 %v348
    %519 = vmatprep.subr.mxu0 0.0
    %520 = vmatpush1.msra.mxu0 %v349
    %521 = vmatprep.subr.mxu0 0.0
    %522 = vmatpush1.msra.mxu0 %v350
    %523 = vmatprep.subr.mxu0 0.0
    %524 = vmatpush1.msra.mxu0 %v351
    %525 = vmatprep.subr.mxu0 0.0
    %526 = vmatpush1.msra.mxu0 %v352
    %527 = vmatprep.subr.mxu0 0.0
    %528 = vmatpush1.msra.mxu0 %v353
    %529 = vmatprep.subr.mxu0 0.0
    %530 = vmatpush1.msra.mxu0 %v354
    %531 = vmatprep.subr.mxu0 0.0
    %532 = vmatpush1.msra.mxu0 %v355
    %533 = vmatprep.subr.mxu0 0.0
    %534 = vmatpush1.msra.mxu0 %v356
    %535 = vmatprep.subr.mxu0 0.0
    %536 = vmatpush1.msra.mxu0 %v357
    %537 = vmatprep.subr.mxu0 0.0
    %538 = vmatpush1.msra.mxu0 %v358
    %539 = vmatprep.subr.mxu0 0.0
    %540 = vmatpush1.msra.mxu0 %v359
    %541 = vmatprep.subr.mxu0 0.0
    %542 = vmatpush1.msra.mxu0 %v360
    %543 = vmatprep.subr.mxu0 0.0
    %544 = vmatpush1.msra.mxu0 %v361
    %545 = vmatprep.subr.mxu0 0.0
    %546 = vmatpush1.msra.mxu0 %v362
    %547 = vmatprep.subr.mxu0 0.0
    %548 = vmatpush1.msra.mxu0 %v363
    %549 = vmatprep.subr.mxu0 0.0
    %550 = vmatpush1.msra.mxu0 %v364
    %551 = vmatprep.subr.mxu0 0.0
    %552 = vmatpush1.msra.mxu0 %v365
    %553 = vmatprep.subr.mxu0 0.0
    %554 = vmatpush1.msra.mxu0 %v366
    %555 = vmatprep.subr.mxu0 0.0
    %556 = vmatpush1.msra.mxu0 %v367
    %557 = vmatprep.subr.mxu0 0.0
    %558 = vmatpush1.msra.mxu0 %v368
    %559 = vmatprep.subr.mxu0 0.0
    %560 = vmatpush1.msra.mxu0 %v369
    %561 = vmatprep.subr.mxu0 0.0
    %562 = vmatpush1.msra.mxu0 %v370
    %563 = vmatprep.mubr.f32.mxu0 %v468
    %564 = vmatmul.mubr.f32.gmra.mrb[0].mxu0 %v467
    %v565 = vpop.f32.mrb[0].mxu0
    %v566 = vadd.f32 0.0, %v565
    %v567 = vpop.f32.mrb[0].mxu0
    %568 = vmatprep.mubr.f32.mxu0 %v476
    %569 = vmatmul.mubr.f32.gmra.mrb[0].mxu0 %v475
    %v570 = vpop.f32.mrb[0].mxu0
    %v571 = vadd.f32 0.0, %v570
    %v572 = vpop.f32.mrb[0].mxu0
    %573 = vmatprep.mubr.f32.mxu0 %v484
    %574 = vmatmul.mubr.f32.gmra.mrb[0].mxu0 %v483
    %v575 = vpop.f32.mrb[0].mxu0
    %v576 = vadd.f32 0.0, %v575
    %v577 = vpop.f32.mrb[0].mxu0
    %578 = vmatprep.mubr.f32.mxu0 %v492
    %579 = vmatmul.mubr.f32.gmra.mrb[0].mxu0 %v491
    %v580 = vpop.f32.mrb[0].mxu0
    %v581 = vadd.f32 0.0, %v580
    %v582 = vpop.f32.mrb[0].mxu0
    %583 = vdwg.mxu0
    %584 = vmatprep.subr.mxu0 0.0
    %585 = vmatpush1.msra.mxu0 %v371
    %586 = vmatprep.subr.mxu0 0.0
    %587 = vmatpush1.msra.mxu0 %v372
    %588 = vmatprep.subr.mxu0 0.0
    %589 = vmatpush1.msra.mxu0 %v373
    %590 = vmatprep.subr.mxu0 0.0
    %591 = vmatpush1.msra.mxu0 %v374
    %592 = vmatprep.subr.mxu0 0.0
    %593 = vmatpush1.msra.mxu0 %v375
    %594 = vmatprep.subr.mxu0 0.0
    %595 = vmatpush1.msra.mxu0 %v376
    %596 = vmatprep.subr.mxu0 0.0
    %597 = vmatpush1.msra.mxu0 %v377
    %598 = vmatprep.subr.mxu0 0.0
    %599 = vmatpush1.msra.mxu0 %v378
    %600 = vmatprep.subr.mxu0 0.0
    %601 = vmatpush1.msra.mxu0 %v379
    %602 = vmatprep.subr.mxu0 0.0
    %603 = vmatpush1.msra.mxu0 %v380
    %604 = vmatprep.subr.mxu0 0.0
    %605 = vmatpush1.msra.mxu0 %v381
    %606 = vmatprep.subr.mxu0 0.0
    %607 = vmatpush1.msra.mxu0 %v382
    %608 = vmatprep.subr.mxu0 0.0
    %609 = vmatpush1.msra.mxu0 %v383
    %610 = vmatprep.subr.mxu0 0.0
    %611 = vmatpush1.msra.mxu0 %v384
    %612 = vmatprep.subr.mxu0 0.0
    %613 = vmatpush1.msra.mxu0 %v385
    %614 = vmatprep.subr.mxu0 0.0
    %615 = vmatpush1.msra.mxu0 %v386
    %616 = vmatprep.subr.mxu0 0.0
    %617 = vmatpush1.msra.mxu0 %v387
    %618 = vmatprep.subr.mxu0 0.0
    %619 = vmatpush1.msra.mxu0 %v388
    %620 = vmatprep.subr.mxu0 0.0
    %621 = vmatpush1.msra.mxu0 %v389
    %622 = vmatprep.subr.mxu0 0.0
    %623 = vmatpush1.msra.mxu0 %v390
    %624 = vmatprep.subr.mxu0 0.0
    %625 = vmatpush1.msra.mxu0 %v391
    %626 = vmatprep.subr.mxu0 0.0
    %627 = vmatpush1.msra.mxu0 %v392
    %628 = vmatprep.subr.mxu0 0.0
    %629 = vmatpush1.msra.mxu0 %v393
    %630 = vmatprep.subr.mxu0 0.0
    %631 = vmatpush1.msra.mxu0 %v394
    %632 = vmatprep.subr.mxu0 0.0
    %633 = vmatpush1.msra.mxu0 %v395
    %634 = vmatprep.subr.mxu0 0.0
    %635 = vmatpush1.msra.mxu0 %v396
    %636 = vmatprep.subr.mxu0 0.0
    %637 = vmatpush1.msra.mxu0 %v397
    %638 = vmatprep.subr.mxu0 0.0
    %639 = vmatpush1.msra.mxu0 %v398
    %640 = vmatprep.subr.mxu0 0.0
    %641 = vmatpush1.msra.mxu0 %v399
    %642 = vmatprep.subr.mxu0 0.0
    %643 = vmatpush1.msra.mxu0 %v400
    %644 = vmatprep.subr.mxu0 0.0
    %645 = vmatpush1.msra.mxu0 %v401
    %646 = vmatprep.subr.mxu0 0.0
    %647 = vmatpush1.msra.mxu0 %v402
    %648 = vmatprep.mubr.f32.mxu0 %v470
    %649 = vmatmul.mubr.f32.gmra.mrb[0].mxu0 %v469
    %v650 = vpop.f32.mrb[0].mxu0
    %v651 = vadd.f32 %v566, %v650
    %v652 = vpop.f32.mrb[0].mxu0
    %653 = vmatprep.mubr.f32.mxu0 %v478
    %654 = vmatmul.mubr.f32.gmra.mrb[0].mxu0 %v477
    %v655 = vpop.f32.mrb[0].mxu0
    %v656 = vadd.f32 %v571, %v655
    %v657 = vpop.f32.mrb[0].mxu0
    %658 = vmatprep.mubr.f32.mxu0 %v486
    %659 = vmatmul.mubr.f32.gmra.mrb[0].mxu0 %v485
    %v660 = vpop.f32.mrb[0].mxu0
    %v661 = vadd.f32 %v576, %v660
    %v662 = vpop.f32.mrb[0].mxu0
    %663 = vmatprep.mubr.f32.mxu0 %v494
    %664 = vmatmul.mubr.f32.gmra.mrb[0].mxu0 %v493
    %v665 = vpop.f32.mrb[0].mxu0
    %v666 = vadd.f32 %v581, %v665
    %v667 = vpop.f32.mrb[0].mxu0
    %668 = vdwg.mxu0
    %669 = vmatprep.subr.mxu0 0.0
    %670 = vmatpush1.msra.mxu0 %v403
    %671 = vmatprep.subr.mxu0 0.0
    %672 = vmatpush1.msra.mxu0 %v404
    %673 = vmatprep.subr.mxu0 0.0
    %674 = vmatpush1.msra.mxu0 %v405
    %675 = vmatprep.subr.mxu0 0.0
    %676 = vmatpush1.msra.mxu0 %v406
    %677 = vmatprep.subr.mxu0 0.0
    %678 = vmatpush1.msra.mxu0 %v407
    %679 = vmatprep.subr.mxu0 0.0
    %680 = vmatpush1.msra.mxu0 %v408
    %681 = vmatprep.subr.mxu0 0.0
    %682 = vmatpush1.msra.mxu0 %v409
    %683 = vmatprep.subr.mxu0 0.0
    %684 = vmatpush1.msra.mxu0 %v410
    %685 = vmatprep.subr.mxu0 0.0
    %686 = vmatpush1.msra.mxu0 %v411
    %687 = vmatprep.subr.mxu0 0.0
    %688 = vmatpush1.msra.mxu0 %v412
    %689 = vmatprep.subr.mxu0 0.0
    %690 = vmatpush1.msra.mxu0 %v413
    %691 = vmatprep.subr.mxu0 0.0
    %692 = vmatpush1.msra.mxu0 %v414
    %693 = vmatprep.subr.mxu0 0.0
    %694 = vmatpush1.msra.mxu0 %v415
    %695 = vmatprep.subr.mxu0 0.0
    %696 = vmatpush1.msra.mxu0 %v416
    %697 = vmatprep.subr.mxu0 0.0
    %698 = vmatpush1.msra.mxu0 %v417
    %699 = vmatprep.subr.mxu0 0.0
    %700 = vmatpush1.msra.mxu0 %v418
    %701 = vmatprep.subr.mxu0 0.0
    %702 = vmatpush1.msra.mxu0 %v419
    %703 = vmatprep.subr.mxu0 0.0
    %704 = vmatpush1.msra.mxu0 %v420
    %705 = vmatprep.subr.mxu0 0.0
    %706 = vmatpush1.msra.mxu0 %v421
    %707 = vmatprep.subr.mxu0 0.0
    %708 = vmatpush1.msra.mxu0 %v422
    %709 = vmatprep.subr.mxu0 0.0
    %710 = vmatpush1.msra.mxu0 %v423
    %711 = vmatprep.subr.mxu0 0.0
    %712 = vmatpush1.msra.mxu0 %v424
    %713 = vmatprep.subr.mxu0 0.0
    %714 = vmatpush1.msra.mxu0 %v425
    %715 = vmatprep.subr.mxu0 0.0
    %716 = vmatpush1.msra.mxu0 %v426
    %717 = vmatprep.subr.mxu0 0.0
    %718 = vmatpush1.msra.mxu0 %v427
    %719 = vmatprep.subr.mxu0 0.0
    %720 = vmatpush1.msra.mxu0 %v428
    %721 = vmatprep.subr.mxu0 0.0
    %722 = vmatpush1.msra.mxu0 %v429
    %723 = vmatprep.subr.mxu0 0.0
    %724 = vmatpush1.msra.mxu0 %v430
    %725 = vmatprep.subr.mxu0 0.0
    %726 = vmatpush1.msra.mxu0 %v431
    %727 = vmatprep.subr.mxu0 0.0
    %728 = vmatpush1.msra.mxu0 %v432
    %729 = vmatprep.subr.mxu0 0.0
    %730 = vmatpush1.msra.mxu0 %v433
    %731 = vmatprep.subr.mxu0 0.0
    %732 = vmatpush1.msra.mxu0 %v434
    %733 = vmatprep.mubr.f32.mxu0 %v472
    %734 = vmatmul.mubr.f32.gmra.mrb[0].mxu0 %v471
    %v735 = vpop.f32.mrb[0].mxu0
    %v736 = vadd.f32 %v651, %v735
    %v737 = vpop.f32.mrb[0].mxu0
    %738 = vmatprep.mubr.f32.mxu0 %v480
    %739 = vmatmul.mubr.f32.gmra.mrb[0].mxu0 %v479
    %v740 = vpop.f32.mrb[0].mxu0
    %v741 = vadd.f32 %v656, %v740
    %v742 = vpop.f32.mrb[0].mxu0
    %743 = vmatprep.mubr.f32.mxu0 %v488
    %744 = vmatmul.mubr.f32.gmra.mrb[0].mxu0 %v487
    %v745 = vpop.f32.mrb[0].mxu0
    %v746 = vadd.f32 %v661, %v745
    %v747 = vpop.f32.mrb[0].mxu0
    %748 = vmatprep.mubr.f32.mxu0 %v496
    %749 = vmatmul.mubr.f32.gmra.mrb[0].mxu0 %v495
    %v750 = vpop.f32.mrb[0].mxu0
    %v751 = vadd.f32 %v666, %v750
    %v752 = vpop.f32.mrb[0].mxu0
    %753 = vdwg.mxu0
    %754 = vmatprep.subr.mxu0 0.0
    %755 = vmatpush1.msra.mxu0 %v435
    %756 = vmatprep.subr.mxu0 0.0
    %757 = vmatpush1.msra.mxu0 %v436
    %758 = vmatprep.subr.mxu0 0.0
    %759 = vmatpush1.msra.mxu0 %v437
    %760 = vmatprep.subr.mxu0 0.0
    %761 = vmatpush1.msra.mxu0 %v438
    %762 = vmatprep.subr.mxu0 0.0
    %763 = vmatpush1.msra.mxu0 %v439
    %764 = vmatprep.subr.mxu0 0.0
    %765 = vmatpush1.msra.mxu0 %v440
    %766 = vmatprep.subr.mxu0 0.0
    %767 = vmatpush1.msra.mxu0 %v441
    %768 = vmatprep.subr.mxu0 0.0
    %769 = vmatpush1.msra.mxu0 %v442
    %770 = vmatprep.subr.mxu0 0.0
    %771 = vmatpush1.msra.mxu0 %v443
    %772 = vmatprep.subr.mxu0 0.0
    %773 = vmatpush1.msra.mxu0 %v444
    %774 = vmatprep.subr.mxu0 0.0
    %775 = vmatpush1.msra.mxu0 %v445
    %776 = vmatprep.subr.mxu0 0.0
    %777 = vmatpush1.msra.mxu0 %v446
    %778 = vmatprep.subr.mxu0 0.0
    %779 = vmatpush1.msra.mxu0 %v447
    %780 = vmatprep.subr.mxu0 0.0
    %781 = vmatpush1.msra.mxu0 %v448
    %782 = vmatprep.subr.mxu0 0.0
    %783 = vmatpush1.msra.mxu0 %v449
    %784 = vmatprep.subr.mxu0 0.0
    %785 = vmatpush1.msra.mxu0 %v450
    %786 = vmatprep.subr.mxu0 0.0
    %787 = vmatpush1.msra.mxu0 %v451
    %788 = vmatprep.subr.mxu0 0.0
    %789 = vmatpush1.msra.mxu0 %v452
    %790 = vmatprep.subr.mxu0 0.0
    %791 = vmatpush1.msra.mxu0 %v453
    %792 = vmatprep.subr.mxu0 0.0
    %793 = vmatpush1.msra.mxu0 %v454
    %794 = vmatprep.subr.mxu0 0.0
    %795 = vmatpush1.msra.mxu0 %v455
    %796 = vmatprep.subr.mxu0 0.0
    %797 = vmatpush1.msra.mxu0 %v456
    %798 = vmatprep.subr.mxu0 0.0
    %799 = vmatpush1.msra.mxu0 %v457
    %800 = vmatprep.subr.mxu0 0.0
    %801 = vmatpush1.msra.mxu0 %v458
    %802 = vmatprep.subr.mxu0 0.0
    %803 = vmatpush1.msra.mxu0 %v459
    %804 = vmatprep.subr.mxu0 0.0
    %805 = vmatpush1.msra.mxu0 %v460
    %806 = vmatprep.subr.mxu0 0.0
    %807 = vmatpush1.msra.mxu0 %v461
    %808 = vmatprep.subr.mxu0 0.0
    %809 = vmatpush1.msra.mxu0 %v462
    %810 = vmatprep.subr.mxu0 0.0
    %811 = vmatpush1.msra.mxu0 %v463
    %812 = vmatprep.subr.mxu0 0.0
    %813 = vmatpush1.msra.mxu0 %v464
    %814 = vmatprep.subr.mxu0 0.0
    %815 = vmatpush1.msra.mxu0 %v465
    %816 = vmatprep.subr.mxu0 0.0
    %817 = vmatpush1.msra.mxu0 %v466
    %818 = vmatprep.mubr.f32.mxu0 %v474
    %819 = vmatmul.mubr.f32.gmra.mrb[0].mxu0 %v473
    %v820 = vpop.f32.mrb[0].mxu0
    %v821 = vadd.f32 %v736, %v820
    %v822 = vpop.f32.mrb[0].mxu0
    %823 = vmatprep.mubr.f32.mxu0 %v482
    %824 = vmatmul.mubr.f32.gmra.mrb[0].mxu0 %v481
    %v825 = vpop.f32.mrb[0].mxu0
    %v826 = vadd.f32 %v741, %v825
    %v827 = vpop.f32.mrb[0].mxu0
    %828 = vmatprep.mubr.f32.mxu0 %v490
    %829 = vmatmul.mubr.f32.gmra.mrb[0].mxu0 %v489
    %v830 = vpop.f32.mrb[0].mxu0
    %v831 = vadd.f32 %v746, %v830
    %v832 = vpop.f32.mrb[0].mxu0
    %833 = vmatprep.mubr.f32.mxu0 %v498
    %834 = vmatmul.mubr.f32.gmra.mrb[0].mxu0 %v497
    %v835 = vpop.f32.mrb[0].mxu0
    %v836 = vadd.f32 %v751, %v835
    %v837 = vpop.f32.mrb[0].mxu0
    %838 = vdwg.mxu0
    %v839 = vsub.f32 1.0, %v53
    %v840 = vsub.f32 1.0, %v54
    %v841 = vsub.f32 1.0, %v55
    %v842 = vmul.f32 %v840, %v841
    %v843 = vmul.f32 %v839, %v841
    %v844 = vmul.f32 %v839, %v840
    %v845 = vmul.f32 %v839, %v842
    %v846 = vmul.f32 %v845, %v821
    %v847 = vadd.f32 %v846, 0.0
    %v848 = vmul.f32 %v842, %v821
    %v849 = vsub.f32 0.0, %v848
    %v850 = vmul.f32 %v843, %v821
    %v851 = vsub.f32 0.0, %v850
    %v852 = vmul.f32 %v844, %v821
    %v853 = vsub.f32 0.0, %v852
    %v854 = vmul.f32 %v845, %v826
    %v855 = vadd.f32 %v854, 0.0
    %v856 = vmul.f32 %v845, %v831
    %v857 = vadd.f32 %v856, 0.0
    %v858 = vmul.f32 %v845, %v836
    %v859 = vadd.f32 %v858, 0.0
    %v860 = vmul.f32 %v53, %v841
    %v861 = vmul.f32 %v53, %v840
    %v862 = vmul.f32 %v53, %v842
    %v864 = vrot.slane %v821, 1
    %v866 = vmul.f32 %v862, %v864
    %v867 = vadd.f32 %v847, %v866
    %v868 = vmul.f32 %v842, %v864
    %v869 = vadd.f32 %v849, %v868
    %v870 = vmul.f32 %v860, %v864
    %v871 = vsub.f32 %v851, %v870
    %v872 = vmul.f32 %v861, %v864
    %v873 = vsub.f32 %v853, %v872
    %v875 = vrot.slane %v826, 1
    %v877 = vmul.f32 %v862, %v875
    %v878 = vadd.f32 %v855, %v877
    %v880 = vrot.slane %v831, 1
    %v882 = vmul.f32 %v862, %v880
    %v883 = vadd.f32 %v857, %v882
    %v885 = vrot.slane %v836, 1
    %v887 = vmul.f32 %v862, %v885
    %v888 = vadd.f32 %v859, %v887
    %v889 = vmul.f32 %v54, %v841
    %v890 = vmul.f32 %v839, %v54
    %v891 = vmul.f32 %v839, %v889
    %v892 = vrot.slane %v821, 2
    %v894 = vmul.f32 %v891, %v892
    %v895 = vadd.f32 %v867, %v894
    %v896 = vmul.f32 %v889, %v892
    %v897 = vsub.f32 %v869, %v896
    %v898 = vmul.f32 %v843, %v892
    %v899 = vadd.f32 %v871, %v898
    %v900 = vmul.f32 %v890, %v892
    %v901 = vsub.f32 %v873, %v900
    %v902 = vrot.slane %v826, 2
    %v904 = vmul.f32 %v891, %v902
    %v905 = vadd.f32 %v878, %v904
    %v906 = vrot.slane %v831, 2
    %v908 = vmul.f32 %v891, %v906
    %v909 = vadd.f32 %v883, %v908
    %v910 = vrot.slane %v836, 2
    %v912 = vmul.f32 %v891, %v910
    %v913 = vadd.f32 %v888, %v912
    %v914 = vmul.f32 %v53, %v54
    %v915 = vmul.f32 %v53, %v889
    %v916 = vrot.slane %v821, 3
    %v918 = vmul.f32 %v915, %v916
    %v919 = vadd.f32 %v895, %v918
    %v920 = vmul.f32 %v889, %v916
    %v921 = vadd.f32 %v897, %v920
    %v922 = vmul.f32 %v860, %v916
    %v923 = vadd.f32 %v899, %v922
    %v924 = vmul.f32 %v914, %v916
    %v925 = vsub.f32 %v901, %v924
    %v926 = vrot.slane %v826, 3
    %v928 = vmul.f32 %v915, %v926
    %v929 = vadd.f32 %v905, %v928
    %v930 = vrot.slane %v831, 3
    %v932 = vmul.f32 %v915, %v930
    %v933 = vadd.f32 %v909, %v932
    %v934 = vrot.slane %v836, 3
    %v936 = vmul.f32 %v915, %v934
    %v937 = vadd.f32 %v913, %v936
    %v938 = vmul.f32 %v840, %v55
    %v939 = vmul.f32 %v839, %v55
    %v940 = vmul.f32 %v839, %v938
    %v941 = vrot.slane %v821, 4
    %v943 = vmul.f32 %v940, %v941
    %v944 = vadd.f32 %v919, %v943
    %v945 = vmul.f32 %v938, %v941
    %v946 = vsub.f32 %v921, %v945
    %v947 = vmul.f32 %v939, %v941
    %v948 = vsub.f32 %v923, %v947
    %v949 = vmul.f32 %v844, %v941
    %v950 = vadd.f32 %v925, %v949
    %v951 = vrot.slane %v826, 4
    %v953 = vmul.f32 %v940, %v951
    %v954 = vadd.f32 %v929, %v953
    %v955 = vrot.slane %v831, 4
    %v957 = vmul.f32 %v940, %v955
    %v958 = vadd.f32 %v933, %v957
    %v959 = vrot.slane %v836, 4
    %v961 = vmul.f32 %v940, %v959
    %v962 = vadd.f32 %v937, %v961
    %v963 = vmul.f32 %v53, %v55
    %v964 = vmul.f32 %v53, %v938
    %v965 = vrot.slane %v821, 5
    %v967 = vmul.f32 %v964, %v965
    %v968 = vadd.f32 %v944, %v967
    %v969 = vmul.f32 %v938, %v965
    %v970 = vadd.f32 %v946, %v969
    %v971 = vmul.f32 %v963, %v965
    %v972 = vsub.f32 %v948, %v971
    %v973 = vmul.f32 %v861, %v965
    %v974 = vadd.f32 %v950, %v973
    %v975 = vrot.slane %v826, 5
    %v977 = vmul.f32 %v964, %v975
    %v978 = vadd.f32 %v954, %v977
    %v979 = vrot.slane %v831, 5
    %v981 = vmul.f32 %v964, %v979
    %v982 = vadd.f32 %v958, %v981
    %v983 = vrot.slane %v836, 5
    %v985 = vmul.f32 %v964, %v983
    %v986 = vadd.f32 %v962, %v985
    %v987 = vmul.f32 %v54, %v55
    %v988 = vmul.f32 %v839, %v987
    %v989 = vrot.slane %v821, 6
    %v991 = vmul.f32 %v988, %v989
    %v992 = vadd.f32 %v968, %v991
    %v993 = vmul.f32 %v987, %v989
    %v994 = vsub.f32 %v970, %v993
    %v995 = vmul.f32 %v939, %v989
    %v996 = vadd.f32 %v972, %v995
    %v997 = vmul.f32 %v890, %v989
    %v998 = vadd.f32 %v974, %v997
    %v999 = vrot.slane %v826, 6
    %v1001 = vmul.f32 %v988, %v999
    %v1002 = vadd.f32 %v978, %v1001
    %v1003 = vrot.slane %v831, 6
    %v1005 = vmul.f32 %v988, %v1003
    %v1006 = vadd.f32 %v982, %v1005
    %v1007 = vrot.slane %v836, 6
    %v1009 = vmul.f32 %v988, %v1007
    %v1010 = vadd.f32 %v986, %v1009
    %v1011 = vmul.f32 %v53, %v987
    %v1012 = vrot.slane %v821, 7
    %v1014 = vmul.f32 %v1011, %v1012
    %v1015 = vadd.f32 %v992, %v1014
    %v1016 = vmul.f32 %v987, %v1012
    %v1017 = vadd.f32 %v994, %v1016
    %v1018 = vmul.f32 %v963, %v1012
    %v1019 = vadd.f32 %v996, %v1018
    %v1020 = vmul.f32 %v914, %v1012
    %v1021 = vadd.f32 %v998, %v1020
    %v1022 = vrot.slane %v826, 7
    %v1024 = vmul.f32 %v1011, %v1022
    %v1025 = vadd.f32 %v1002, %v1024
    %v1026 = vrot.slane %v831, 7
    %v1028 = vmul.f32 %v1011, %v1026
    %v1029 = vadd.f32 %v1006, %v1028
    %v1030 = vrot.slane %v836, 7
    %v1032 = vmul.f32 %v1011, %v1030
    %v1033 = vadd.f32 %v1010, %v1032
    %s1034 = sld [smem:[#allocation3]]
    %s1035 = sld [smem:[#allocation3 + $0x1]]
    %s1036 = sld [smem:[#allocation3 + $0x2]]
    %s1037 = sld [smem:[#allocation3 + $0x3]]
    %s1038 = sld [smem:[#allocation3 + $0x4]]
    %s1039 = sld [smem:[#allocation3 + $0x5]]
    %v1040 = vstv %s1034
    %v1041 = vmul.f32 %v1017, %v1040
    %v1042 = vstv %s1035
    %v1043 = vmul.f32 %v1019, %v1042
    %v1044 = vstv %s1036
    %v1045 = vmul.f32 %v1021, %v1044
    %v1046 = vadd.f32 %v1025, 0.5
    %v1047 = vsub.f32 0.0, %v1046
    %v1048 = vmul.f32 %v1047, 1.442695
    %v1049 = vpow.pop %v1048
    %v1050 = vadd.f32 %v1049, 1.0
    %v1051 = vrcp.pop %v1050
    %v1052 = vmul.f32 1.0, %v1051
    %v1053 = vadd.f32 %v1029, 0.5
    %v1054 = vsub.f32 0.0, %v1053
    %v1055 = vmul.f32 %v1054, 1.442695
    %v1056 = vpow.pop %v1055
    %v1057 = vadd.f32 %v1056, 1.0
    %v1058 = vrcp.pop %v1057
    %v1059 = vmul.f32 1.0, %v1058
    %v1060 = vadd.f32 %v1033, 0.5
    %v1061 = vsub.f32 0.0, %v1060
    %v1062 = vmul.f32 %v1061, 1.442695
    %v1063 = vpow.pop %v1062
    %v1064 = vadd.f32 %v1063, 1.0
    %v1065 = vrcp.pop %v1064
    %v1066 = vmul.f32 1.0, %v1065
    %v1067 = vmul.f32 %v1041, %v1041
    %v1068 = vmul.f32 %v1043, %v1043
    %v1069 = vadd.f32 %v1067, %v1068
    %v1070 = vmul.f32 %v1045, %v1045
    %v1071 = vadd.f32 %v1069, %v1070
    %v1072 = vrsqrt.pop %v1071
    %v1073 = vmul.f32 %v1071, %v1072
    %vm1074 = vcmp.eq.f32.partialorder %v1071, inf
    %v1075 = vsel %vm1074, %v1071, %v1073
    %vm1076 = vcmp.eq.f32.partialorder %v1071, 0.0
    %v1077 = vand.u32 %v1071, 2147483648
    %v1078 = vsel %vm1076, %v1077, %v1075
    %v1079 = vmax.f32 %v1078, 1e-12
    %v1080 = vrcp.pop %v1079
    %v1081 = vmul.f32 %v1041, %v1080
    %v1082 = vmul.f32 %v1043, %v1080
    %v1083 = vmul.f32 %v1045, %v1080
    %v1084 = vand.u32 2147483647, %v1015
    %v1085 = vsub.f32 0.0, %v1084
    %v1086 = vstv %s1037
    %v1087 = vmul.f32 %v1085, %v1086
    %v1088 = vmul.f32 %v1087, 1.442695
    %v1089 = vpow.pop %v1088
    %vm1090 = vcmp.ge.f32.partialorder %v1015, 0.0
    %v1091 = vmul.f32 %v1089, 0.5
    %v1092 = vsub.f32 1.0, %v1091
    %v1093 = vsel %vm1090, %v1091, %v1092
    %v1094 = vmul.f32 %v1086, %v1093
    %v1095 = vmul.f32 %v46, %v1041
    %v1096 = vmul.f32 %v47, %v1043
    %v1097 = vadd.f32 %v1095, %v1096
    %v1098 = vmul.f32 %v48, %v1045
    %v1099 = vadd.f32 %v1097, %v1098
    %v1100 = vsub.f32 0.0, %v1099
    %v1101 = vmul.f32 %v1100, 0.5
    %v1102 = vadd.f32 %v1101, 0.5
    %v1103 = vmax.f32 %v1102, 0.0
    %s1104 = ssub.f32 1.0, %s1039
    %v1105 = vstv %s1104
    %v1106 = vmul.f32 %v1103, %v1105
    %v1107 = vmax.f32 %v1100, 0.0
    %v1108 = vstv %s1039
    %v1109 = vmul.f32 %v1107, %v1108
    %v1110 = vadd.f32 %v1106, %v1109
    %v1111 = vsub.f32 0.0, %v1110
    %v1112 = vmul.f32 %v1111, %v49
    %v1113 = vmul.f32 %v1112, 0.5
    %v1114 = vadd.f32 %v1015, %v1113
    %v1115 = vsub.f32 %v1015, %v1113
    %v1116 = vstv %s1038
    %v1117 = vmul.f32 %v1115, %v1116
    %v1118 = vsub.f32 0.0, %v1117
    %v1119 = vmul.f32 %v1118, 1.442695
    %v1120 = vpow.pop %v1119
    %v1121 = vadd.f32 %v1120, 1.0
    %v1122 = vrcp.pop %v1121
    %v1123 = vmul.f32 1.0, %v1122
    %v1124 = vmul.f32 %v1114, %v1116
    %v1125 = vsub.f32 0.0, %v1124
    %v1126 = vmul.f32 %v1125, 1.442695
    %v1127 = vpow.pop %v1126
    %v1128 = vadd.f32 %v1127, 1.0
    %v1129 = vrcp.pop %v1128
    %v1130 = vmul.f32 1.0, %v1129
    %v1131 = vsub.f32 %v1123, %v1130
    %v1132 = vadd.f32 %v1131, 1e-05
    %v1133 = vadd.f32 %v1123, 1e-05
    %v1134 = vrcp.pop %v1133
    %v1135 = vmul.f32 %v1132, %v1134
    %v1136 = vmax.f32 %v1135, 0.0
    %v1137 = vmin.f32 %v1136, 1.0
    %1138 = vst [vmem:[#allocation9] sm:$0x1] %v1015
    %1139 = vst [vmem:[#allocation9 + $0x1] sm:$0x1] %v1041
    %1140 = vst [vmem:[#allocation9 + $0x2] sm:$0x1] %v1043
    %1141 = vst [vmem:[#allocation9 + $0x3] sm:$0x1] %v1045
    %1142 = vst [vmem:[#allocation9 + $0x4] sm:$0x1] %v1081
    %1143 = vst [vmem:[#allocation9 + $0x5] sm:$0x1] %v1082
    %1144 = vst [vmem:[#allocation9 + $0x6] sm:$0x1] %v1083
    %1145 = vst [vmem:[#allocation9 + $0x7] sm:$0x1] %v1052
    %1146 = vst [vmem:[#allocation9 + $0x8] sm:$0x1] %v1059
    %1147 = vst [vmem:[#allocation9 + $0x9] sm:$0x1] %v1066
    %1148 = vst [vmem:[#allocation9 + $0xa] sm:$0x1] %v1094
    %1149 = vst [vmem:[#allocation9 + $0xb] sm:$0x1] %v1137
    %1150 = vst [vmem:[#allocation9 + $0xc] sm:$0xf] 0.0
    // Predicated region
    $region18: #{tpu_custom_call.1} parent=1 // pred_check
      _
    $region19: #{tpu_custom_call.1} parent=1 // pred_check_branch
      %1152 = sbr.rel (0) target = $region21
    $region20: #{tpu_custom_call.1} parent=1 // pred_region
      %s1154 = ssub.s32 256, 256
      %1155 = vsyncadd [#allocation6], %s1154
      %s1156 = sshll.u32 [#allocation9], 4
      %s1157 = int_to_ptr.vmem [resolvable:$true] %s1156
      %1162 = dma.vmem_to_hbm [thread:$0]  %s1157, 256, %s3, [#allocation6], 128, 128, 8
    $region21: #{tpu_custom_call.1} parent=1 // pred_fallthru
      _
    // Predicated region
    $region22: #{tpu_custom_call.1} parent=1 // pred_check
      _
    $region23: #{tpu_custom_call.1} parent=1 // pred_check_branch
      %1164 = sbr.rel (0) target = $region25
    $region24: #{tpu_custom_call.1} parent=1 // pred_region
      %1165 = dma.done [#allocation6], 256
    $region25: #{tpu_custom_call.1} parent=1 // pred_fallthru
      _
    %1166 = vsyncpa [#allocation5], 1
    %1167 = vsyncpa [#allocation8], 1
    %1168 = vsyncpa [#allocation6], 1

</llo_original>
